<compile_context>
chip_gen: v6e
topology: v6e:2x2x1
jax: 0.10.0
libtpu: 0.0.40
codegen_flags: <defaults>
</compile_context>

<pallas_src>
import jax
import jax.numpy as jnp
from jax import lax
from jax.experimental import pallas as pl
from jax.experimental.pallas import tpu as pltpu


def cross_attention_kernel(
    seq1_ref, seq2_ref,          # (1, T1, D), (1, T2, D)
    w1_ref, b1_ref,              # (D, 3D), (1, 3D): [q1 | k1 | v1] applied to seq1
    w2_ref, b2_ref,              # (D, 3D), (1, 3D): [k2 | v2 | q2] applied to seq2
    wo_ref, bo_ref,              # (D, O), (1, O)   shared output projection
    out1_ref, out2_ref,          # (1, T1, O), (1, T2, O)
):
    D = w1_ref.shape[0]
    inv_scale = 1.0 / (float(D) ** 0.5)   # PyTorch: / seq.size(-1) ** 0.5

    x1 = seq1_ref[0]  # (T1, D)
    x2 = seq2_ref[0]  # (T2, D)

    # Fused input projections: one MXU matmul per sequence (weights stacked
    # along the lane axis; D=128 keeps the slices tile-aligned).
    p1 = jnp.dot(x1, w1_ref[...], preferred_element_type=jnp.float32) + b1_ref[...]
    p2 = jnp.dot(x2, w2_ref[...], preferred_element_type=jnp.float32) + b2_ref[...]

    q1, k1, v1 = p1[:, :D], p1[:, D:2 * D], p1[:, 2 * D:]
    k2, v2, q2 = p2[:, :D], p2[:, D:2 * D], p2[:, 2 * D:]

    def softmax_last(x):
        m = jnp.max(x, axis=-1, keepdims=True)
        e = jnp.exp(x - m)
        return e / jnp.sum(e, axis=-1, keepdims=True)

    contract_last = (((1,), (1,)), ((), ()))   # (m,d) x (n,d) -> (m,n)

    # Attention 1: seq1 queries attend over seq2 keys/values.
    s1 = lax.dot_general(q1, k2, contract_last,
                         preferred_element_type=jnp.float32) * inv_scale
    a1 = jnp.dot(softmax_last(s1), v2, preferred_element_type=jnp.float32)

    # Attention 2: seq2 queries attend over seq1 keys/values.
    s2 = lax.dot_general(q2, k1, contract_last,
                         preferred_element_type=jnp.float32) * inv_scale
    a2 = jnp.dot(softmax_last(s2), v1, preferred_element_type=jnp.float32)

    # TODO(synk): nn.Dropout on the attention weights is applied as identity
    # (eval/inference semantics); train-mode framework RNG dropout is omitted.

    # Shared output projection; O = 128 -> lane-dense stores.
    out1_ref[0] = (jnp.dot(a1, wo_ref[...], preferred_element_type=jnp.float32)
                   + bo_ref[...]).astype(out1_ref.dtype)
    out2_ref[0] = (jnp.dot(a2, wo_ref[...], preferred_element_type=jnp.float32)
                   + bo_ref[...]).astype(out2_ref.dtype)


@jax.jit
def cross_attention_forward(seq1, seq2, params):
    """seq1: (B, T1, D), seq2: (B, T2, D) -> ((B, T1, O), (B, T2, O))."""
    B, T1, D = seq1.shape
    B2, T2, D2 = seq2.shape
    assert B == B2 and D == D2
    O = params["w_out"].shape[0]
    f32 = jnp.float32

    # Stack the three projections applied to each sequence into one matmul.
    # seq1 goes through query_proj_1, key_proj_2, value_proj_2 -> [q1 | k1 | v1]
    w1 = jnp.concatenate(
        [params["w_q1"].T, params["w_k2"].T, params["w_v2"].T], axis=1).astype(f32)
    b1 = jnp.concatenate(
        [params["b_q1"], params["b_k2"], params["b_v2"]]).reshape(1, 3 * D).astype(f32)
    # seq2 goes through key_proj_1, value_proj_1, query_proj_2 -> [k2 | v2 | q2]
    w2 = jnp.concatenate(
        [params["w_k1"].T, params["w_v1"].T, params["w_q2"].T], axis=1).astype(f32)
    b2 = jnp.concatenate(
        [params["b_k1"], params["b_v1"], params["b_q2"]]).reshape(1, 3 * D).astype(f32)
    wo = params["w_out"].T.astype(f32)               # (D, O)
    bo = params["b_out"].reshape(1, O).astype(f32)   # (1, O)

    grid_spec = pltpu.PrefetchScalarGridSpec(
        num_scalar_prefetch=0,
        grid=(B,),
        in_specs=[
            pl.BlockSpec((1, T1, D), lambda b: (b, 0, 0)),
            pl.BlockSpec((1, T2, D), lambda b: (b, 0, 0)),
            pl.BlockSpec((D, 3 * D), lambda b: (0, 0)),
            pl.BlockSpec((1, 3 * D), lambda b: (0, 0)),
            pl.BlockSpec((D, 3 * D), lambda b: (0, 0)),
            pl.BlockSpec((1, 3 * D), lambda b: (0, 0)),
            pl.BlockSpec((D, O), lambda b: (0, 0)),
            pl.BlockSpec((1, O), lambda b: (0, 0)),
        ],
        out_specs=(
            pl.BlockSpec((1, T1, O), lambda b: (b, 0, 0)),
            pl.BlockSpec((1, T2, O), lambda b: (b, 0, 0)),
        ),
    )

    out1, out2 = pl.pallas_call(
        cross_attention_kernel,
        out_shape=(jax.ShapeDtypeStruct((B, T1, O), f32),
                   jax.ShapeDtypeStruct((B, T2, O), f32)),
        grid_spec=grid_spec,
        compiler_params=pltpu.CompilerParams(
            dimension_semantics=("parallel",),   # batch is embarrassingly parallel
        ),
    )(seq1.astype(f32), seq2.astype(f32), w1, b1, w2, b2, wo, bo)
    return out1, out2


def init_cross_attention_params(key, input_size, output_size):
    """nn.Linear default init: U(-1/sqrt(fan_in), 1/sqrt(fan_in))."""
    def linear(k, out_f, in_f):
        kw, kb = jax.random.split(k)
        bound = 1.0 / (in_f ** 0.5)
        w = jax.random.uniform(kw, (out_f, in_f), jnp.float32, -bound, bound)
        b = jax.random.uniform(kb, (out_f,), jnp.float32, -bound, bound)
        return w, b

    keys = jax.random.split(key, 7)
    p = {}
    p["w_q1"], p["b_q1"] = linear(keys[0], input_size, input_size)
    p["w_k1"], p["b_k1"] = linear(keys[1], input_size, input_size)
    p["w_v1"], p["b_v1"] = linear(keys[2], input_size, input_size)
    p["w_q2"], p["b_q2"] = linear(keys[3], input_size, input_size)
    p["w_k2"], p["b_k2"] = linear(keys[4], input_size, input_size)
    p["w_v2"], p["b_v2"] = linear(keys[5], input_size, input_size)
    p["w_out"], p["b_out"] = linear(keys[6], output_size, input_size)
    return p


def _reference_cross_attention(seq1, seq2, p):
    """Pure-JAX mirror of the PyTorch forward (eval mode) for a sanity check."""
    def lin(x, w, b):
        return jnp.einsum("btd,od->bto", x, w) + b

    scale1 = seq1.shape[-1] ** 0.5
    scale2 = seq2.shape[-1] ** 0.5

    q1 = lin(seq1, p["w_q1"], p["b_q1"])
    k2 = lin(seq2, p["w_k1"], p["b_k1"])
    v2 = lin(seq2, p["w_v1"], p["b_v1"])
    a1 = jax.nn.softmax(jnp.einsum("bqd,bkd->bqk", q1, k2) / scale1, axis=-1)
    o1 = jnp.einsum("bqk,bkd->bqd", a1, v2)

    q2 = lin(seq2, p["w_q2"], p["b_q2"])
    k1 = lin(seq1, p["w_k2"], p["b_k2"])
    v1 = lin(seq1, p["w_v2"], p["b_v2"])
    a2 = jax.nn.softmax(jnp.einsum("bqd,bkd->bqk", q2, k1) / scale2, axis=-1)
    o2 = jnp.einsum("bqk,bkd->bqd", a2, v1)

    c1 = lin(o1, p["w_out"], p["b_out"])
    c2 = lin(o2, p["w_out"], p["b_out"])
    return c1, c2


if __name__ == "__main__":
    B, T1, T2 = 2, 8, 16
    INPUT_SIZE, OUTPUT_SIZE = 128, 128   # lane-dense feature dims

    key = jax.random.PRNGKey(0)
    ks1, ks2, kp = jax.random.split(key, 3)
    seq1 = jax.random.normal(ks1, (B, T1, INPUT_SIZE), dtype=jnp.float32)
    seq2 = jax.random.normal(ks2, (B, T2, INPUT_SIZE), dtype=jnp.float32)
    params = init_cross_attention_params(kp, INPUT_SIZE, OUTPUT_SIZE)

    out1, out2 = cross_attention_forward(seq1, seq2, params)
    out1, out2 = jax.block_until_ready((out1, out2))

    # Reference in full f32 precision; tolerance allows for MXU pass
    # decomposition / accumulation-order differences.
    with jax.default_matmul_precision("highest"):
        ref1, ref2 = _reference_cross_attention(seq1, seq2, params)
    assert out1.shape == (B, T1, OUTPUT_SIZE)
    assert out2.shape == (B, T2, OUTPUT_SIZE)
    assert jnp.allclose(out1, ref1, atol=5e-3, rtol=5e-3)
    assert jnp.allclose(out2, ref2, atol=5e-3, rtol=5e-3)

    print("KERNEL_OK")
</pallas_src>

<mosaic_0001>
module attributes {stable_mosaic.version = 11 : i64} {
  func.func @cross_attention_kernel(%arg0: i32, %arg1: memref<1x8x128xf32, #tpu.memory_space<vmem>>, %arg2: memref<1x16x128xf32, #tpu.memory_space<vmem>>, %arg3: memref<128x384xf32, #tpu.memory_space<vmem>>, %arg4: memref<1x384xf32, #tpu.memory_space<vmem>>, %arg5: memref<128x384xf32, #tpu.memory_space<vmem>>, %arg6: memref<1x384xf32, #tpu.memory_space<vmem>>, %arg7: memref<128x128xf32, #tpu.memory_space<vmem>>, %arg8: memref<1x128xf32, #tpu.memory_space<vmem>>, %arg9: memref<1x8x128xf32, #tpu.memory_space<vmem>>, %arg10: memref<1x16x128xf32, #tpu.memory_space<vmem>>) attributes {dimension_semantics = [#tpu.dimension_semantics<parallel>], iteration_bounds = array<i64: 2>, scalar_prefetch = 0 : i64, scratch_operands = 0 : i64, tpu.core_type = #tpu.core_type<tc>, window_params = [{transform_indices = @transform_0, window_bounds = array<i64: 1, 8, 128>}, {transform_indices = @transform_1, window_bounds = array<i64: 1, 16, 128>}, {pipeline_mode = #tpu.pipeline_mode<synchronous>, transform_indices = @transform_2, window_bounds = array<i64: 128, 384>}, {pipeline_mode = #tpu.pipeline_mode<synchronous>, transform_indices = @transform_3, window_bounds = array<i64: 1, 384>}, {pipeline_mode = #tpu.pipeline_mode<synchronous>, transform_indices = @transform_4, window_bounds = array<i64: 128, 384>}, {pipeline_mode = #tpu.pipeline_mode<synchronous>, transform_indices = @transform_5, window_bounds = array<i64: 1, 384>}, {pipeline_mode = #tpu.pipeline_mode<synchronous>, transform_indices = @transform_6, window_bounds = array<i64: 128, 128>}, {pipeline_mode = #tpu.pipeline_mode<synchronous>, transform_indices = @transform_7, window_bounds = array<i64: 1, 128>}, {transform_indices = @transform_8, window_bounds = array<i64: 1, 8, 128>}, {transform_indices = @transform_9, window_bounds = array<i64: 1, 16, 128>}]} {
    %c0 = arith.constant 0 : index
    %c0_0 = arith.constant 0 : index
    %c0_1 = arith.constant 0 : index
    %0 = vector.load %arg1[%c0, %c0_0, %c0_1] : memref<1x8x128xf32, #tpu.memory_space<vmem>>, vector<1x8x128xf32>
    %1 = vector.shape_cast %0 : vector<1x8x128xf32> to vector<8x128xf32>
    %c0_2 = arith.constant 0 : index
    %c0_3 = arith.constant 0 : index
    %c0_4 = arith.constant 0 : index
    %2 = vector.load %arg2[%c0_2, %c0_3, %c0_4] : memref<1x16x128xf32, #tpu.memory_space<vmem>>, vector<1x16x128xf32>
    %3 = vector.shape_cast %2 : vector<1x16x128xf32> to vector<16x128xf32>
    %c0_5 = arith.constant 0 : index
    %c0_6 = arith.constant 0 : index
    %4 = vector.load %arg3[%c0_5, %c0_6] : memref<128x384xf32, #tpu.memory_space<vmem>>, vector<128x384xf32>
    %cst = arith.constant dense<0.000000e+00> : vector<8x384xf32>
    %5 = tpu.matmul %1, %4, %cst {dimension_numbers = #tpu.dot_dimension_numbers<[1], [0], [0], [1], [0, 0, 1, 1], [], []>} : vector<8x128xf32>, vector<128x384xf32>, vector<8x384xf32> -> vector<8x384xf32>
    %c0_7 = arith.constant 0 : index
    %c0_8 = arith.constant 0 : index
    %6 = vector.load %arg4[%c0_7, %c0_8] : memref<1x384xf32, #tpu.memory_space<vmem>>, vector<1x384xf32>
    %7 = vector.broadcast %6 : vector<1x384xf32> to vector<8x384xf32>
    %8 = arith.addf %5, %7 : vector<8x384xf32>
    %c0_9 = arith.constant 0 : index
    %c0_10 = arith.constant 0 : index
    %9 = vector.load %arg5[%c0_9, %c0_10] : memref<128x384xf32, #tpu.memory_space<vmem>>, vector<128x384xf32>
    %cst_11 = arith.constant dense<0.000000e+00> : vector<16x384xf32>
    %10 = tpu.matmul %3, %9, %cst_11 {dimension_numbers = #tpu.dot_dimension_numbers<[1], [0], [0], [1], [0, 0, 1, 1], [], []>} : vector<16x128xf32>, vector<128x384xf32>, vector<16x384xf32> -> vector<16x384xf32>
    %c0_12 = arith.constant 0 : index
    %c0_13 = arith.constant 0 : index
    %11 = vector.load %arg6[%c0_12, %c0_13] : memref<1x384xf32, #tpu.memory_space<vmem>>, vector<1x384xf32>
    %12 = vector.broadcast %11 : vector<1x384xf32> to vector<16x384xf32>
    %13 = arith.addf %10, %12 : vector<16x384xf32>
    %14 = vector.extract_strided_slice %8 {offsets = [0, 0], sizes = [8, 128], strides = [1, 1]} : vector<8x384xf32> to vector<8x128xf32>
    %15 = vector.extract_strided_slice %8 {offsets = [0, 128], sizes = [8, 128], strides = [1, 1]} : vector<8x384xf32> to vector<8x128xf32>
    %16 = vector.extract_strided_slice %8 {offsets = [0, 256], sizes = [8, 128], strides = [1, 1]} : vector<8x384xf32> to vector<8x128xf32>
    %17 = vector.extract_strided_slice %13 {offsets = [0, 0], sizes = [16, 128], strides = [1, 1]} : vector<16x384xf32> to vector<16x128xf32>
    %18 = vector.extract_strided_slice %13 {offsets = [0, 128], sizes = [16, 128], strides = [1, 1]} : vector<16x384xf32> to vector<16x128xf32>
    %19 = vector.extract_strided_slice %13 {offsets = [0, 256], sizes = [16, 128], strides = [1, 1]} : vector<16x384xf32> to vector<16x128xf32>
    %cst_14 = arith.constant dense<0.000000e+00> : vector<8x16xf32>
    %20 = tpu.matmul %14, %17, %cst_14 {dimension_numbers = #tpu.dot_dimension_numbers<[1], [1], [0], [0], [0, 0, 1, 0], [], []>} : vector<8x128xf32>, vector<16x128xf32>, vector<8x16xf32> -> vector<8x16xf32>
    %cst_15 = arith.constant 0.0883883461 : f32
    %21 = vector.broadcast %cst_15 : f32 to vector<8x16xf32>
    %22 = arith.mulf %20, %21 : vector<8x16xf32>
    %cst_16 = arith.constant dense<0xFF800000> : vector<8xf32>
    %23 = vector.multi_reduction <maximumf>, %22, %cst_16 [1] : vector<8x16xf32> to vector<8xf32>
    %24 = vector.shape_cast %23 : vector<8xf32> to vector<8x1xf32>
    %25 = vector.broadcast %24 : vector<8x1xf32> to vector<8x16xf32>
    %26 = arith.subf %22, %25 : vector<8x16xf32>
    %27 = math.exp %26 : vector<8x16xf32>
    %cst_17 = arith.constant dense<0.000000e+00> : vector<8xf32>
    %28 = vector.multi_reduction <add>, %27, %cst_17 [1] : vector<8x16xf32> to vector<8xf32>
    %29 = vector.shape_cast %28 : vector<8xf32> to vector<8x1xf32>
    %30 = vector.broadcast %29 : vector<8x1xf32> to vector<8x16xf32>
    %31 = arith.divf %27, %30 : vector<8x16xf32>
    %cst_18 = arith.constant dense<0.000000e+00> : vector<8x128xf32>
    %32 = tpu.matmul %31, %18, %cst_18 {dimension_numbers = #tpu.dot_dimension_numbers<[1], [0], [0], [1], [0, 0, 1, 1], [], []>} : vector<8x16xf32>, vector<16x128xf32>, vector<8x128xf32> -> vector<8x128xf32>
    %cst_19 = arith.constant dense<0.000000e+00> : vector<16x8xf32>
    %33 = tpu.matmul %19, %15, %cst_19 {dimension_numbers = #tpu.dot_dimension_numbers<[1], [1], [0], [0], [0, 0, 1, 0], [], []>} : vector<16x128xf32>, vector<8x128xf32>, vector<16x8xf32> -> vector<16x8xf32>
    %cst_20 = arith.constant 0.0883883461 : f32
    %34 = vector.broadcast %cst_20 : f32 to vector<16x8xf32>
    %35 = arith.mulf %33, %34 : vector<16x8xf32>
    %cst_21 = arith.constant dense<0xFF800000> : vector<16xf32>
    %36 = vector.multi_reduction <maximumf>, %35, %cst_21 [1] : vector<16x8xf32> to vector<16xf32>
    %37 = vector.shape_cast %36 : vector<16xf32> to vector<16x1xf32>
    %38 = vector.broadcast %37 : vector<16x1xf32> to vector<16x8xf32>
    %39 = arith.subf %35, %38 : vector<16x8xf32>
    %40 = math.exp %39 : vector<16x8xf32>
    %cst_22 = arith.constant dense<0.000000e+00> : vector<16xf32>
    %41 = vector.multi_reduction <add>, %40, %cst_22 [1] : vector<16x8xf32> to vector<16xf32>
    %42 = vector.shape_cast %41 : vector<16xf32> to vector<16x1xf32>
    %43 = vector.broadcast %42 : vector<16x1xf32> to vector<16x8xf32>
    %44 = arith.divf %40, %43 : vector<16x8xf32>
    %cst_23 = arith.constant dense<0.000000e+00> : vector<16x128xf32>
    %45 = tpu.matmul %44, %16, %cst_23 {dimension_numbers = #tpu.dot_dimension_numbers<[1], [0], [0], [1], [0, 0, 1, 1], [], []>} : vector<16x8xf32>, vector<8x128xf32>, vector<16x128xf32> -> vector<16x128xf32>
    %c0_24 = arith.constant 0 : index
    %c0_25 = arith.constant 0 : index
    %46 = vector.load %arg7[%c0_24, %c0_25] : memref<128x128xf32, #tpu.memory_space<vmem>>, vector<128x128xf32>
    %cst_26 = arith.constant dense<0.000000e+00> : vector<8x128xf32>
    %47 = tpu.matmul %32, %46, %cst_26 {dimension_numbers = #tpu.dot_dimension_numbers<[1], [0], [0], [1], [0, 0, 1, 1], [], []>} : vector<8x128xf32>, vector<128x128xf32>, vector<8x128xf32> -> vector<8x128xf32>
    %c0_27 = arith.constant 0 : index
    %c0_28 = arith.constant 0 : index
    %48 = vector.load %arg8[%c0_27, %c0_28] : memref<1x128xf32, #tpu.memory_space<vmem>>, vector<1x128xf32>
    %49 = vector.broadcast %48 : vector<1x128xf32> to vector<8x128xf32>
    %50 = arith.addf %47, %49 : vector<8x128xf32>
    %c0_29 = arith.constant 0 : index
    %c0_30 = arith.constant 0 : index
    %c0_31 = arith.constant 0 : index
    %51 = vector.load %arg9[%c0_29, %c0_30, %c0_31] : memref<1x8x128xf32, #tpu.memory_space<vmem>>, vector<1x8x128xf32>
    %52 = vector.shape_cast %51 : vector<1x8x128xf32> to vector<8x128xf32>
    %53 = vector.shape_cast %50 : vector<8x128xf32> to vector<1x8x128xf32>
    tpu.vector_store %arg9[%c0_29, %c0_30, %c0_31], %53 {strides = array<i32>} : memref<1x8x128xf32, #tpu.memory_space<vmem>>, vector<1x8x128xf32>,
    %c0_32 = arith.constant 0 : index
    %c0_33 = arith.constant 0 : index
    %54 = vector.load %arg7[%c0_32, %c0_33] : memref<128x128xf32, #tpu.memory_space<vmem>>, vector<128x128xf32>
    %cst_34 = arith.constant dense<0.000000e+00> : vector<16x128xf32>
    %55 = tpu.matmul %45, %54, %cst_34 {dimension_numbers = #tpu.dot_dimension_numbers<[1], [0], [0], [1], [0, 0, 1, 1], [], []>} : vector<16x128xf32>, vector<128x128xf32>, vector<16x128xf32> -> vector<16x128xf32>
    %c0_35 = arith.constant 0 : index
    %c0_36 = arith.constant 0 : index
    %56 = vector.load %arg8[%c0_35, %c0_36] : memref<1x128xf32, #tpu.memory_space<vmem>>, vector<1x128xf32>
    %57 = vector.broadcast %56 : vector<1x128xf32> to vector<16x128xf32>
    %58 = arith.addf %55, %57 : vector<16x128xf32>
    %c0_37 = arith.constant 0 : index
    %c0_38 = arith.constant 0 : index
    %c0_39 = arith.constant 0 : index
    %59 = vector.load %arg10[%c0_37, %c0_38, %c0_39] : memref<1x16x128xf32, #tpu.memory_space<vmem>>, vector<1x16x128xf32>
    %60 = vector.shape_cast %59 : vector<1x16x128xf32> to vector<16x128xf32>
    %61 = vector.shape_cast %58 : vector<16x128xf32> to vector<1x16x128xf32>
    tpu.vector_store %arg10[%c0_37, %c0_38, %c0_39], %61 {strides = array<i32>} : memref<1x16x128xf32, #tpu.memory_space<vmem>>, vector<1x16x128xf32>,
    return
  }
  func.func @transform_0(%arg0: i32) -> (i32, i32, i32) {
    %c0_i32 = arith.constant 0 : i32
    %c0_i32_0 = arith.constant 0 : i32
    %c0_i32_1 = arith.constant 0 : i32
    return %arg0, %c0_i32, %c0_i32_0 : i32, i32, i32
  }
  func.func @transform_1(%arg0: i32) -> (i32, i32, i32) {
    %c0_i32 = arith.constant 0 : i32
    %c0_i32_0 = arith.constant 0 : i32
    %c0_i32_1 = arith.constant 0 : i32
    return %arg0, %c0_i32, %c0_i32_0 : i32, i32, i32
  }
  func.func @transform_2(%arg0: i32) -> (i32, i32) {
    %c0_i32 = arith.constant 0 : i32
    %c0_i32_0 = arith.constant 0 : i32
    %c0_i32_1 = arith.constant 0 : i32
    return %c0_i32, %c0_i32_0 : i32, i32
  }
  func.func @transform_3(%arg0: i32) -> (i32, i32) {
    %c0_i32 = arith.constant 0 : i32
    %c0_i32_0 = arith.constant 0 : i32
    %c0_i32_1 = arith.constant 0 : i32
    return %c0_i32, %c0_i32_0 : i32, i32
  }
  func.func @transform_4(%arg0: i32) -> (i32, i32) {
    %c0_i32 = arith.constant 0 : i32
    %c0_i32_0 = arith.constant 0 : i32
    %c0_i32_1 = arith.constant 0 : i32
    return %c0_i32, %c0_i32_0 : i32, i32
  }
  func.func @transform_5(%arg0: i32) -> (i32, i32) {
    %c0_i32 = arith.constant 0 : i32
    %c0_i32_0 = arith.constant 0 : i32
    %c0_i32_1 = arith.constant 0 : i32
    return %c0_i32, %c0_i32_0 : i32, i32
  }
  func.func @transform_6(%arg0: i32) -> (i32, i32) {
    %c0_i32 = arith.constant 0 : i32
    %c0_i32_0 = arith.constant 0 : i32
    %c0_i32_1 = arith.constant 0 : i32
    return %c0_i32, %c0_i32_0 : i32, i32
  }
  func.func @transform_7(%arg0: i32) -> (i32, i32) {
    %c0_i32 = arith.constant 0 : i32
    %c0_i32_0 = arith.constant 0 : i32
    %c0_i32_1 = arith.constant 0 : i32
    return %c0_i32, %c0_i32_0 : i32, i32
  }
  func.func @transform_8(%arg0: i32) -> (i32, i32, i32) {
    %c0_i32 = arith.constant 0 : i32
    %c0_i32_0 = arith.constant 0 : i32
    %c0_i32_1 = arith.constant 0 : i32
    return %arg0, %c0_i32, %c0_i32_0 : i32, i32, i32
  }
  func.func @transform_9(%arg0: i32) -> (i32, i32, i32) {
    %c0_i32 = arith.constant 0 : i32
    %c0_i32_0 = arith.constant 0 : i32
    %c0_i32_1 = arith.constant 0 : i32
    return %arg0, %c0_i32, %c0_i32_0 : i32, i32, i32
  }
}

</mosaic_0001>

<llo_original>
// kernel: cross_attention_forward.1
$region0: #{cross_attention_forward.1}
  #allocation0 [shape = 'u32[]', space=smem, size = 0x4, offset = 0x4, fixed_abs, tag = 'smem constant byte address 0x4 - core index']
  #allocation1 [shape = 'u32[144,128]{1,0:T(1,128)}', space=vmem, size = 0x12000, scoped, tag = 'internal scratch']
  %s0 = inlined_call_operand.vmem [shape: f32[2,8,128], index: 0, kind: input, shape index: {}]
  %s1 = inlined_call_operand.vmem [shape: f32[2,16,128], index: 1, kind: input, shape index: {}]
  %s2 = inlined_call_operand.vmem [shape: f32[128,384], index: 2, kind: input, shape index: {}]
  %s3 = inlined_call_operand.vmem [shape: f32[1,384], index: 3, kind: input, shape index: {}]
  %s4 = inlined_call_operand.vmem [shape: f32[128,384], index: 4, kind: input, shape index: {}]
  %s5 = inlined_call_operand.vmem [shape: f32[1,384], index: 5, kind: input, shape index: {}]
  %s6 = inlined_call_operand.vmem [shape: f32[128,128], index: 6, kind: input, shape index: {}]
  %s7 = inlined_call_operand.vmem [shape: f32[1,128], index: 7, kind: input, shape index: {}]
  %s8 = inlined_call_operand.hbm [shape: f32[2,8,128], index: 8, kind: output, shape index: {0}]
  %s9 = inlined_call_operand.hbm [shape: f32[2,16,128], index: 9, kind: output, shape index: {1}]
  %10 = xla_tuple %s8, %s9
  %s11 = sld [smem:[#allocation0]]
  $region73: #{cross_attention_forward.1} parent=0
    _
  %s13 = ssub.s32 1, %s11
  %s14 = scalar_select 0, %s13, %s11
  $region1: #{cross_attention_forward.1} parent=0
    #allocation2 [shape = 'u8[8192]{0}', space=vmem, size = 0x2000, scoped, tag = 'output window, operand 0']
    #allocation3 [shape = 's32[2]{0}', space=sflag, size = 0x8, scoped, tag = 'scoped memory for cross_attention_forward.1']
    #allocation4 [shape = 'u8[16384]{0}', space=vmem, size = 0x4000, scoped, tag = 'output window, operand 1']
    #allocation5 [shape = 's32[2]{0}', space=sflag, size = 0x8, scoped, tag = 'scoped memory for cross_attention_forward.1']
    %15 = vsyncpa [#allocation3], 0
    %s16 = scalar_lea.sflag [#allocation3], 1
    %17 = vsyncpa %s16, 0
    %18 = vsyncpa [#allocation5], 0
    %s19 = scalar_lea.sflag [#allocation5], 1
    %20 = vsyncpa %s19, 0
    loop: start=0, step=1, limit=4
    $region2: #{cross_attention_forward.1} parent=1 // loop_pre_header
      _
    $region3: #{cross_attention_forward.1} parent=1 // loop_header
      %s22 = sphi 0, %s26
      %p23 = scmp.ge.s32.totalorder %s22, 4
      %s32 = sphi 0, %s34
      %s35 = sphi 0, %s32
      %s36 = sphi 0, %s35
      %s52 = sphi 0, %s36
      %s58 = sphi 0, %s60
      %s61 = sphi 0, %s58
      %s62 = sphi 0, %s61
      %s78 = sphi 0, %s62
      %s82 = sphi 0, %s82
      %s84 = sphi 0, %s82
      %s85 = sphi 0, %s84
      %s99 = sphi 0, %s85
      %s103 = sphi 0, %s103
      %s105 = sphi 0, %s103
      %s106 = sphi 0, %s105
      %s120 = sphi 0, %s106
      %s124 = sphi 0, %s124
      %s126 = sphi 0, %s124
      %s127 = sphi 0, %s126
      %s141 = sphi 0, %s127
      %s145 = sphi 0, %s145
      %s147 = sphi 0, %s145
      %s148 = sphi 0, %s147
      %s162 = sphi 0, %s148
      %s166 = sphi 0, %s166
      %s168 = sphi 0, %s166
      %s169 = sphi 0, %s168
      %s183 = sphi 0, %s169
      %s187 = sphi 0, %s187
      %s189 = sphi 0, %s187
      %s190 = sphi 0, %s189
      %s204 = sphi 0, %s190
      %s210 = sphi 0, %s212
      %s213 = sphi 0, %s210
      %s214 = sphi 0, %s213
      %s230 = sphi 0, %s214
      %s236 = sphi 0, %s238
      %s239 = sphi 0, %s236
      %s240 = sphi 0, %s239
      %s256 = sphi 0, %s240
    $region4: #{cross_attention_forward.1} parent=1 // loop_header_branch
      %25 = sbr.rel (%p23) target = $region8
    $region5: #{cross_attention_forward.1} parent=1 // loop_body
      %s27 = ssub.s32 %s22, 1
      %s28 = ssub.s32 %s22, 2
      %s29 = sadd.s32 %s22, 1
      %s30 = ssub.s32 %s22, %s29
      %p31 = scmp.eq.s32.totalorder %s30, 0
      %s33 = sadd.s32 %s32, 1
      %s34 = scalar_select %p31, %s32, %s33
      %p37 = pneg %p31
      %p38 = scmp.eq.s32.totalorder %s22, 1
      %p39 = por %p37, %p38
      %p40 = scmp.ne.s32.totalorder %s32, %s35
      %p41 = scmp.eq.s32.totalorder %s22, 0
      %p42 = por %p40, %p41
      %p43 = scmp.ne.s32.totalorder %s32, %s35
      %p44 = scmp.eq.s32.totalorder %s27, 1
      %p45 = por %p43, %p44
      %p46 = scmp.ne.s32.totalorder %s35, %s36
      %p47 = scmp.eq.s32.totalorder %s27, 0
      %p48 = por %p46, %p47
      %p49 = scmp.ne.s32.totalorder %s35, %s36
      %p50 = scmp.eq.s32.totalorder %s28, 1
      %p51 = por %p49, %p50
      %p53 = scmp.ne.s32.totalorder %s36, %s52
      %p54 = scmp.eq.s32.totalorder %s28, 0
      %p55 = por %p53, %p54
      %s56 = ssub.s32 %s22, %s29
      %p57 = scmp.eq.s32.totalorder %s56, 0
      %s59 = sadd.s32 %s58, 1
      %s60 = scalar_select %p57, %s58, %s59
      %p63 = pneg %p57
      %p64 = scmp.eq.s32.totalorder %s22, 1
      %p65 = por %p63, %p64
      %p66 = scmp.ne.s32.totalorder %s58, %s61
      %p67 = scmp.eq.s32.totalorder %s22, 0
      %p68 = por %p66, %p67
      %p69 = scmp.ne.s32.totalorder %s58, %s61
      %p70 = scmp.eq.s32.totalorder %s27, 1
      %p71 = por %p69, %p70
      %p72 = scmp.ne.s32.totalorder %s61, %s62
      %p73 = scmp.eq.s32.totalorder %s27, 0
      %p74 = por %p72, %p73
      %p75 = scmp.ne.s32.totalorder %s61, %s62
      %p76 = scmp.eq.s32.totalorder %s28, 1
      %p77 = por %p75, %p76
      %p79 = scmp.ne.s32.totalorder %s62, %s78
      %p80 = scmp.eq.s32.totalorder %s28, 0
      %p81 = por %p79, %p80
      %s83 = sadd.s32 %s82, 1
      %p86 = scmp.eq.s32.totalorder %s22, 1
      %p87 = scmp.ne.s32.totalorder %s82, %s84
      %p88 = scmp.eq.s32.totalorder %s22, 0
      %p89 = por %p87, %p88
      %p90 = scmp.ne.s32.totalorder %s82, %s84
      %p91 = scmp.eq.s32.totalorder %s27, 1
      %p92 = por %p90, %p91
      %p93 = scmp.ne.s32.totalorder %s84, %s85
      %p94 = scmp.eq.s32.totalorder %s27, 0
      %p95 = por %p93, %p94
      %p96 = scmp.ne.s32.totalorder %s84, %s85
      %p97 = scmp.eq.s32.totalorder %s28, 1
      %p98 = por %p96, %p97
      %p100 = scmp.ne.s32.totalorder %s85, %s99
      %p101 = scmp.eq.s32.totalorder %s28, 0
      %p102 = por %p100, %p101
      %s104 = sadd.s32 %s103, 1
      %p107 = scmp.eq.s32.totalorder %s22, 1
      %p108 = scmp.ne.s32.totalorder %s103, %s105
      %p109 = scmp.eq.s32.totalorder %s22, 0
      %p110 = por %p108, %p109
      %p111 = scmp.ne.s32.totalorder %s103, %s105
      %p112 = scmp.eq.s32.totalorder %s27, 1
      %p113 = por %p111, %p112
      %p114 = scmp.ne.s32.totalorder %s105, %s106
      %p115 = scmp.eq.s32.totalorder %s27, 0
      %p116 = por %p114, %p115
      %p117 = scmp.ne.s32.totalorder %s105, %s106
      %p118 = scmp.eq.s32.totalorder %s28, 1
      %p119 = por %p117, %p118
      %p121 = scmp.ne.s32.totalorder %s106, %s120
      %p122 = scmp.eq.s32.totalorder %s28, 0
      %p123 = por %p121, %p122
      %s125 = sadd.s32 %s124, 1
      %p128 = scmp.eq.s32.totalorder %s22, 1
      %p129 = scmp.ne.s32.totalorder %s124, %s126
      %p130 = scmp.eq.s32.totalorder %s22, 0
      %p131 = por %p129, %p130
      %p132 = scmp.ne.s32.totalorder %s124, %s126
      %p133 = scmp.eq.s32.totalorder %s27, 1
      %p134 = por %p132, %p133
      %p135 = scmp.ne.s32.totalorder %s126, %s127
      %p136 = scmp.eq.s32.totalorder %s27, 0
      %p137 = por %p135, %p136
      %p138 = scmp.ne.s32.totalorder %s126, %s127
      %p139 = scmp.eq.s32.totalorder %s28, 1
      %p140 = por %p138, %p139
      %p142 = scmp.ne.s32.totalorder %s127, %s141
      %p143 = scmp.eq.s32.totalorder %s28, 0
      %p144 = por %p142, %p143
      %s146 = sadd.s32 %s145, 1
      %p149 = scmp.eq.s32.totalorder %s22, 1
      %p150 = scmp.ne.s32.totalorder %s145, %s147
      %p151 = scmp.eq.s32.totalorder %s22, 0
      %p152 = por %p150, %p151
      %p153 = scmp.ne.s32.totalorder %s145, %s147
      %p154 = scmp.eq.s32.totalorder %s27, 1
      %p155 = por %p153, %p154
      %p156 = scmp.ne.s32.totalorder %s147, %s148
      %p157 = scmp.eq.s32.totalorder %s27, 0
      %p158 = por %p156, %p157
      %p159 = scmp.ne.s32.totalorder %s147, %s148
      %p160 = scmp.eq.s32.totalorder %s28, 1
      %p161 = por %p159, %p160
      %p163 = scmp.ne.s32.totalorder %s148, %s162
      %p164 = scmp.eq.s32.totalorder %s28, 0
      %p165 = por %p163, %p164
      %s167 = sadd.s32 %s166, 1
      %p170 = scmp.eq.s32.totalorder %s22, 1
      %p171 = scmp.ne.s32.totalorder %s166, %s168
      %p172 = scmp.eq.s32.totalorder %s22, 0
      %p173 = por %p171, %p172
      %p174 = scmp.ne.s32.totalorder %s166, %s168
      %p175 = scmp.eq.s32.totalorder %s27, 1
      %p176 = por %p174, %p175
      %p177 = scmp.ne.s32.totalorder %s168, %s169
      %p178 = scmp.eq.s32.totalorder %s27, 0
      %p179 = por %p177, %p178
      %p180 = scmp.ne.s32.totalorder %s168, %s169
      %p181 = scmp.eq.s32.totalorder %s28, 1
      %p182 = por %p180, %p181
      %p184 = scmp.ne.s32.totalorder %s169, %s183
      %p185 = scmp.eq.s32.totalorder %s28, 0
      %p186 = por %p184, %p185
      %s188 = sadd.s32 %s187, 1
      %p191 = scmp.eq.s32.totalorder %s22, 1
      %p192 = scmp.ne.s32.totalorder %s187, %s189
      %p193 = scmp.eq.s32.totalorder %s22, 0
      %p194 = por %p192, %p193
      %p195 = scmp.ne.s32.totalorder %s187, %s189
      %p196 = scmp.eq.s32.totalorder %s27, 1
      %p197 = por %p195, %p196
      %p198 = scmp.ne.s32.totalorder %s189, %s190
      %p199 = scmp.eq.s32.totalorder %s27, 0
      %p200 = por %p198, %p199
      %p201 = scmp.ne.s32.totalorder %s189, %s190
      %p202 = scmp.eq.s32.totalorder %s28, 1
      %p203 = por %p201, %p202
      %p205 = scmp.ne.s32.totalorder %s190, %s204
      %p206 = scmp.eq.s32.totalorder %s28, 0
      %p207 = por %p205, %p206
      %s208 = ssub.s32 %s22, %s29
      %p209 = scmp.eq.s32.totalorder %s208, 0
      %s211 = sadd.s32 %s210, 1
      %s212 = scalar_select %p209, %s210, %s211
      %p215 = pneg %p209
      %p216 = scmp.eq.s32.totalorder %s22, 1
      %p217 = por %p215, %p216
      %p218 = scmp.ne.s32.totalorder %s210, %s213
      %p219 = scmp.eq.s32.totalorder %s22, 0
      %p220 = por %p218, %p219
      %p221 = scmp.ne.s32.totalorder %s210, %s213
      %p222 = scmp.eq.s32.totalorder %s27, 1
      %p223 = por %p221, %p222
      %p224 = scmp.ne.s32.totalorder %s213, %s214
      %p225 = scmp.eq.s32.totalorder %s27, 0
      %p226 = por %p224, %p225
      %p227 = scmp.ne.s32.totalorder %s213, %s214
      %p228 = scmp.eq.s32.totalorder %s28, 1
      %p229 = por %p227, %p228
      %p231 = scmp.ne.s32.totalorder %s214, %s230
      %p232 = scmp.eq.s32.totalorder %s28, 0
      %p233 = por %p231, %p232
      %s234 = ssub.s32 %s22, %s29
      %p235 = scmp.eq.s32.totalorder %s234, 0
      %s237 = sadd.s32 %s236, 1
      %s238 = scalar_select %p235, %s236, %s237
      %p241 = pneg %p235
      %p242 = scmp.eq.s32.totalorder %s22, 1
      %p243 = por %p241, %p242
      %p244 = scmp.ne.s32.totalorder %s236, %s239
      %p245 = scmp.eq.s32.totalorder %s22, 0
      %p246 = por %p244, %p245
      %p247 = scmp.ne.s32.totalorder %s236, %s239
      %p248 = scmp.eq.s32.totalorder %s27, 1
      %p249 = por %p247, %p248
      %p250 = scmp.ne.s32.totalorder %s239, %s240
      %p251 = scmp.eq.s32.totalorder %s27, 0
      %p252 = por %p250, %p251
      %p253 = scmp.ne.s32.totalorder %s239, %s240
      %p254 = scmp.eq.s32.totalorder %s28, 1
      %p255 = por %p253, %p254
      %p257 = scmp.ne.s32.totalorder %s240, %s256
      %p258 = scmp.eq.s32.totalorder %s28, 0
      %p259 = por %p257, %p258
      %p260 = scmp.le.s32.totalorder 1, %s22
      %p261 = scmp.lt.s32.totalorder %s22, 3
      %p262 = pnand %p260, %p261
      %p263 = pneg %p262
      // Predicated region
      $region9: #{cross_attention_forward.1} parent=5 // pred_check
        _
      $region10: #{cross_attention_forward.1} parent=5 // pred_check_branch
        %265 = sbr.rel (%p262) target = $region12
      $region11: #{cross_attention_forward.1} parent=5 // pred_region
        %s266 = ssub.s32 %s22, 1
        // Predicated region
        $region13: #{cross_attention_forward.1} parent=11 // pred_check
          %p267 = pneg %p95
        $region14: #{cross_attention_forward.1} parent=11 // pred_check_branch
          %269 = sbr.rel (%p267) target = $region16
        $region15: #{cross_attention_forward.1} parent=11 // pred_region
          _
        $region16: #{cross_attention_forward.1} parent=11 // pred_fallthru
          _
        // Predicated region
        $region17: #{cross_attention_forward.1} parent=11 // pred_check
          %p270 = pneg %p116
        $region18: #{cross_attention_forward.1} parent=11 // pred_check_branch
          %272 = sbr.rel (%p270) target = $region20
        $region19: #{cross_attention_forward.1} parent=11 // pred_region
          _
        $region20: #{cross_attention_forward.1} parent=11 // pred_fallthru
          _
        // Predicated region
        $region21: #{cross_attention_forward.1} parent=11 // pred_check
          %p273 = pneg %p137
        $region22: #{cross_attention_forward.1} parent=11 // pred_check_branch
          %275 = sbr.rel (%p273) target = $region24
        $region23: #{cross_attention_forward.1} parent=11 // pred_region
          _
        $region24: #{cross_attention_forward.1} parent=11 // pred_fallthru
          _
        // Predicated region
        $region25: #{cross_attention_forward.1} parent=11 // pred_check
          %p276 = pneg %p158
        $region26: #{cross_attention_forward.1} parent=11 // pred_check_branch
          %278 = sbr.rel (%p276) target = $region28
        $region27: #{cross_attention_forward.1} parent=11 // pred_region
          _
        $region28: #{cross_attention_forward.1} parent=11 // pred_fallthru
          _
        // Predicated region
        $region29: #{cross_attention_forward.1} parent=11 // pred_check
          %p279 = pneg %p179
        $region30: #{cross_attention_forward.1} parent=11 // pred_check_branch
          %281 = sbr.rel (%p279) target = $region32
        $region31: #{cross_attention_forward.1} parent=11 // pred_region
          _
        $region32: #{cross_attention_forward.1} parent=11 // pred_fallthru
          _
        // Predicated region
        $region33: #{cross_attention_forward.1} parent=11 // pred_check
          %p282 = pneg %p200
        $region34: #{cross_attention_forward.1} parent=11 // pred_check_branch
          %284 = sbr.rel (%p282) target = $region36
        $region35: #{cross_attention_forward.1} parent=11 // pred_region
          _
        $region36: #{cross_attention_forward.1} parent=11 // pred_fallthru
          _
      $region12: #{cross_attention_forward.1} parent=5 // pred_fallthru
        _
      %p285 = scmp.lt.s32.totalorder %s22, 2
      // Predicated region
      $region37: #{cross_attention_forward.1} parent=5 // pred_check
        %p286 = pneg %p285
      $region38: #{cross_attention_forward.1} parent=5 // pred_check_branch
        %288 = sbr.rel (%p286) target = $region40
      $region39: #{cross_attention_forward.1} parent=5 // pred_region
        // Predicated region
        $region41: #{cross_attention_forward.1} parent=39 // pred_check
          %p289 = pneg %p42
        $region42: #{cross_attention_forward.1} parent=39 // pred_check_branch
          %291 = sbr.rel (%p289) target = $region44
        $region43: #{cross_attention_forward.1} parent=39 // pred_region
          %p292 = scmp.lt.s32.totalorder %s22, 1
          %s293 = scalar_select %p292, %s22, 1
          %s294 = smul.addr %s293, 8
          %s295 = scalar_lea.vmem %s0, %s294
        $region44: #{cross_attention_forward.1} parent=39 // pred_fallthru
          _
        // Predicated region
        $region45: #{cross_attention_forward.1} parent=39 // pred_check
          %p296 = pneg %p68
        $region46: #{cross_attention_forward.1} parent=39 // pred_check_branch
          %298 = sbr.rel (%p296) target = $region48
        $region47: #{cross_attention_forward.1} parent=39 // pred_region
          %p299 = scmp.lt.s32.totalorder %s22, 1
          %s300 = scalar_select %p299, %s22, 1
          %s301 = smul.addr %s300, 2
          %s302 = smul.addr %s301, 8
          %s303 = scalar_lea.vmem %s1, %s302
        $region48: #{cross_attention_forward.1} parent=39 // pred_fallthru
          _
      $region40: #{cross_attention_forward.1} parent=5 // pred_fallthru
        _
      %p304 = scmp.le.s32.totalorder 1, %s22
      %p305 = scmp.lt.s32.totalorder %s22, 3
      %p306 = pnand %p304, %p305
      %p307 = pneg %p306
      // Predicated region
      $region49: #{cross_attention_forward.1} parent=5 // pred_check
        _
      $region50: #{cross_attention_forward.1} parent=5 // pred_check_branch
        %309 = sbr.rel (%p306) target = $region52
      $region51: #{cross_attention_forward.1} parent=5 // pred_region
        %s310 = ssub.s32 %s22, 1
        %p311 = scmp.lt.s32.totalorder %s27, 1
        %s312 = scalar_select %p311, %s27, 1
        %s313 = smul.addr %s312, 8
        %s314 = scalar_lea.vmem %s0, %s313
        %p315 = pneg %p48
        %p316 = pneg %p45
        %p317 = scmp.lt.s32.totalorder %s27, 1
        %s318 = scalar_select %p317, %s27, 1
        %s319 = smul.addr %s318, 2
        %s320 = smul.addr %s319, 8
        %s321 = scalar_lea.vmem %s1, %s320
        %p322 = pneg %p74
        %p323 = pneg %p71
        %p324 = pneg %p95
        %p325 = pneg %p92
        %p326 = pneg %p116
        %p327 = pneg %p113
        %p328 = pneg %p137
        %p329 = pneg %p134
        %p330 = pneg %p158
        %p331 = pneg %p155
        %p332 = pneg %p179
        %p333 = pneg %p176
        %p334 = pneg %p200
        %p335 = pneg %p197
        %p336 = pneg %p226
        %p337 = pneg %p223
        %s338 = sand.u32 %s213, 1
        %s339 = scalar_lea.sflag [#allocation3], %s338
        %s340 = sand.u32 %s213, 1
        %s341 = smul.addr %s340, 8
        %s342 = scalar_lea.vmem [#allocation2], %s341
        %p343 = pneg %p252
        %p344 = pneg %p249
        %s345 = sand.u32 %s239, 1
        %s346 = scalar_lea.sflag [#allocation5], %s345
        %s347 = sand.u32 %s239, 1
        %s348 = smul.addr %s347, 16
        %s349 = scalar_lea.vmem [#allocation4], %s348
        %p350 = scmp.lt.s32.totalorder %s27, 1
        %s351 = scalar_select %p350, %s27, 1
        %s352 = smul.addr %s351, 8
        %s353 = scalar_lea.vmem %s0, %s352
        %p354 = scmp.lt.s32.totalorder %s27, 1
        %s355 = scalar_select %p354, %s27, 1
        %s356 = smul.addr %s355, 2
        %s357 = smul.addr %s356, 8
        %s358 = scalar_lea.vmem %s1, %s357
        %v359 = vld [vmem:[%s353] sm:$0xff]
        %v360 = vld [vmem:[%s358] sm:$0xff]
        %v361 = vld [vmem:[%s358 + $0x8] sm:$0xff]
        %v362 = vld [vmem:[%s2] sm:$0xff]
        %v363 = vld [vmem:[%s2 + $0x8] sm:$0xff]
        %v364 = vld [vmem:[%s2 + $0x10] sm:$0xff]
        %v365 = vld [vmem:[%s2 + $0x18] sm:$0xff]
        %v366 = vld [vmem:[%s2 + $0x20] sm:$0xff]
        %v367 = vld [vmem:[%s2 + $0x28] sm:$0xff]
        %v368 = vld [vmem:[%s2 + $0x30] sm:$0xff]
        %v369 = vld [vmem:[%s2 + $0x38] sm:$0xff]
        %v370 = vld [vmem:[%s2 + $0x40] sm:$0xff]
        %v371 = vld [vmem:[%s2 + $0x48] sm:$0xff]
        %v372 = vld [vmem:[%s2 + $0x50] sm:$0xff]
        %v373 = vld [vmem:[%s2 + $0x58] sm:$0xff]
        %v374 = vld [vmem:[%s2 + $0x60] sm:$0xff]
        %v375 = vld [vmem:[%s2 + $0x68] sm:$0xff]
        %v376 = vld [vmem:[%s2 + $0x70] sm:$0xff]
        %v377 = vld [vmem:[%s2 + $0x78] sm:$0xff]
        %v378 = vld [vmem:[%s2 + $0x80] sm:$0xff]
        %v379 = vld [vmem:[%s2 + $0x88] sm:$0xff]
        %v380 = vld [vmem:[%s2 + $0x90] sm:$0xff]
        %v381 = vld [vmem:[%s2 + $0x98] sm:$0xff]
        %v382 = vld [vmem:[%s2 + $0xa0] sm:$0xff]
        %v383 = vld [vmem:[%s2 + $0xa8] sm:$0xff]
        %v384 = vld [vmem:[%s2 + $0xb0] sm:$0xff]
        %v385 = vld [vmem:[%s2 + $0xb8] sm:$0xff]
        %v386 = vld [vmem:[%s2 + $0xc0] sm:$0xff]
        %v387 = vld [vmem:[%s2 + $0xc8] sm:$0xff]
        %v388 = vld [vmem:[%s2 + $0xd0] sm:$0xff]
        %v389 = vld [vmem:[%s2 + $0xd8] sm:$0xff]
        %v390 = vld [vmem:[%s2 + $0xe0] sm:$0xff]
        %v391 = vld [vmem:[%s2 + $0xe8] sm:$0xff]
        %v392 = vld [vmem:[%s2 + $0xf0] sm:$0xff]
        %v393 = vld [vmem:[%s2 + $0xf8] sm:$0xff]
        %v394 = vld [vmem:[%s2 + $0x100] sm:$0xff]
        %v395 = vld [vmem:[%s2 + $0x108] sm:$0xff]
        %v396 = vld [vmem:[%s2 + $0x110] sm:$0xff]
        %v397 = vld [vmem:[%s2 + $0x118] sm:$0xff]
        %v398 = vld [vmem:[%s2 + $0x120] sm:$0xff]
        %v399 = vld [vmem:[%s2 + $0x128] sm:$0xff]
        %v400 = vld [vmem:[%s2 + $0x130] sm:$0xff]
        %v401 = vld [vmem:[%s2 + $0x138] sm:$0xff]
        %v402 = vld [vmem:[%s2 + $0x140] sm:$0xff]
        %v403 = vld [vmem:[%s2 + $0x148] sm:$0xff]
        %v404 = vld [vmem:[%s2 + $0x150] sm:$0xff]
        %v405 = vld [vmem:[%s2 + $0x158] sm:$0xff]
        %v406 = vld [vmem:[%s2 + $0x160] sm:$0xff]
        %v407 = vld [vmem:[%s2 + $0x168] sm:$0xff]
        %v408 = vld [vmem:[%s2 + $0x170] sm:$0xff]
        %v409 = vld [vmem:[%s2 + $0x178] sm:$0xff]
        %v410 = vld [vmem:[%s3] sm:$0x7]
        %v412 = vlaneseq
        %v413 = vshrl.u32 %v412, 7
        %v414 = vsub.s32 0, %v413
        %v415 = vrot.slane %v410, %v414
        %v416 = vlaneseq
        %v417 = vshrl.u32 %v416, 7
        %v418 = vsub.s32 1, %v417
        %v419 = vrot.slane %v410, %v418
        %v420 = vlaneseq
        %v421 = vshrl.u32 %v420, 7
        %v422 = vsub.s32 2, %v421
        %v423 = vrot.slane %v410, %v422
        %427 = vmatprep.subr.mxu0 %v408
        %428 = vmatpush1.msra.mxu0 %v407
        %429 = vmatprep.subr.mxu0 %v405
        %430 = vmatpush1.msra.mxu0 %v404
        %431 = vmatprep.subr.mxu0 %v402
        %432 = vmatpush1.msra.mxu0 %v401
        %433 = vmatprep.subr.mxu0 %v399
        %434 = vmatpush1.msra.mxu0 %v398
        %435 = vmatprep.subr.mxu0 %v396
        %436 = vmatpush1.msra.mxu0 %v395
        %437 = vmatprep.subr.mxu0 %v393
        %438 = vmatpush1.msra.mxu0 %v392
        %439 = vmatprep.subr.mxu0 %v390
        %440 = vmatpush1.msra.mxu0 %v389
        %441 = vmatprep.subr.mxu0 %v387
        %442 = vmatpush1.msra.mxu0 %v386
        %443 = vmatprep.subr.mxu0 %v384
        %444 = vmatpush1.msra.mxu0 %v383
        %445 = vmatprep.subr.mxu0 %v381
        %446 = vmatpush1.msra.mxu0 %v380
        %447 = vmatprep.subr.mxu0 %v378
        %448 = vmatpush1.msra.mxu0 %v377
        %449 = vmatprep.subr.mxu0 %v375
        %450 = vmatpush1.msra.mxu0 %v374
        %451 = vmatprep.subr.mxu0 %v372
        %452 = vmatpush1.msra.mxu0 %v371
        %453 = vmatprep.subr.mxu0 %v369
        %454 = vmatpush1.msra.mxu0 %v368
        %455 = vmatprep.subr.mxu0 %v366
        %456 = vmatpush1.msra.mxu0 %v365
        %457 = vmatprep.subr.mxu0 %v363
        %458 = vmatpush1.msra.mxu0 %v362
        %459 = vmatprep.subr.mxu0 0.0
        %460 = vmatpush2.msra.mxu0 0.0
        %461 = vmatprep.subr.mxu0 0.0
        %462 = vmatpush2.msra.mxu0 0.0
        %463 = vmatprep.subr.mxu0 0.0
        %464 = vmatpush2.msra.mxu0 0.0
        %465 = vmatprep.subr.mxu0 0.0
        %466 = vmatpush2.msra.mxu0 0.0
        %467 = vmatprep.subr.mxu0 0.0
        %468 = vmatpush2.msra.mxu0 0.0
        %469 = vmatprep.subr.mxu0 0.0
        %470 = vmatpush2.msra.mxu0 0.0
        %471 = vmatprep.subr.mxu0 0.0
        %472 = vmatpush2.msra.mxu0 0.0
        %473 = vmatprep.subr.mxu0 0.0
        %474 = vmatpush2.msra.mxu0 0.0
        %475 = vmatprep.subr.mxu0 0.0
        %476 = vmatpush2.msra.mxu0 0.0
        %477 = vmatprep.subr.mxu0 0.0
        %478 = vmatpush2.msra.mxu0 0.0
        %479 = vmatprep.subr.mxu0 0.0
        %480 = vmatpush2.msra.mxu0 0.0
        %481 = vmatprep.subr.mxu0 0.0
        %482 = vmatpush2.msra.mxu0 0.0
        %483 = vmatprep.subr.mxu0 0.0
        %484 = vmatpush2.msra.mxu0 0.0
        %485 = vmatprep.subr.mxu0 0.0
        %486 = vmatpush2.msra.mxu0 0.0
        %487 = vmatprep.subr.mxu0 0.0
        %488 = vmatpush2.msra.mxu0 0.0
        %489 = vmatprep.subr.mxu0 0.0
        %490 = vmatpush2.msra.mxu0 0.0
        %491 = vmatprep.mubr.f32.mxu0 0.0
        %492 = vmatmul.mubr.f32.gmra.mxu0 %v359
        %v493 = vpop.f32.mrf.mxu0
        %v494 = vadd.f32 %v415, %v493
        %v495 = vpop.f32.mrf.mxu0
        %v496 = vadd.f32 %v419, %v495
        %497 = vdwg.mxu0
        %498 = vmatprep.subr.mxu0 0.0
        %499 = vmatpush1.msra.mxu0 %v409
        %500 = vmatprep.subr.mxu0 0.0
        %501 = vmatpush1.msra.mxu0 %v406
        %502 = vmatprep.subr.mxu0 0.0
        %503 = vmatpush1.msra.mxu0 %v403
        %504 = vmatprep.subr.mxu0 0.0
        %505 = vmatpush1.msra.mxu0 %v400
        %506 = vmatprep.subr.mxu0 0.0
        %507 = vmatpush1.msra.mxu0 %v397
        %508 = vmatprep.subr.mxu0 0.0
        %509 = vmatpush1.msra.mxu0 %v394
        %510 = vmatprep.subr.mxu0 0.0
        %511 = vmatpush1.msra.mxu0 %v391
        %512 = vmatprep.subr.mxu0 0.0
        %513 = vmatpush1.msra.mxu0 %v388
        %514 = vmatprep.subr.mxu0 0.0
        %515 = vmatpush1.msra.mxu0 %v385
        %516 = vmatprep.subr.mxu0 0.0
        %517 = vmatpush1.msra.mxu0 %v382
        %518 = vmatprep.subr.mxu0 0.0
        %519 = vmatpush1.msra.mxu0 %v379
        %520 = vmatprep.subr.mxu0 0.0
        %521 = vmatpush1.msra.mxu0 %v376
        %522 = vmatprep.subr.mxu0 0.0
        %523 = vmatpush1.msra.mxu0 %v373
        %524 = vmatprep.subr.mxu0 0.0
        %525 = vmatpush1.msra.mxu0 %v370
        %526 = vmatprep.subr.mxu0 0.0
        %527 = vmatpush1.msra.mxu0 %v367
        %528 = vmatprep.subr.mxu0 0.0
        %529 = vmatpush1.msra.mxu0 %v364
        %530 = vmatprep.subr.mxu0 0.0
        %531 = vmatpush2.msra.mxu0 0.0
        %532 = vmatprep.subr.mxu0 0.0
        %533 = vmatpush2.msra.mxu0 0.0
        %534 = vmatprep.subr.mxu0 0.0
        %535 = vmatpush2.msra.mxu0 0.0
        %536 = vmatprep.subr.mxu0 0.0
        %537 = vmatpush2.msra.mxu0 0.0
        %538 = vmatprep.subr.mxu0 0.0
        %539 = vmatpush2.msra.mxu0 0.0
        %540 = vmatprep.subr.mxu0 0.0
        %541 = vmatpush2.msra.mxu0 0.0
        %542 = vmatprep.subr.mxu0 0.0
        %543 = vmatpush2.msra.mxu0 0.0
        %544 = vmatprep.subr.mxu0 0.0
        %545 = vmatpush2.msra.mxu0 0.0
        %546 = vmatprep.subr.mxu0 0.0
        %547 = vmatpush2.msra.mxu0 0.0
        %548 = vmatprep.subr.mxu0 0.0
        %549 = vmatpush2.msra.mxu0 0.0
        %550 = vmatprep.subr.mxu0 0.0
        %551 = vmatpush2.msra.mxu0 0.0
        %552 = vmatprep.subr.mxu0 0.0
        %553 = vmatpush2.msra.mxu0 0.0
        %554 = vmatprep.subr.mxu0 0.0
        %555 = vmatpush2.msra.mxu0 0.0
        %556 = vmatprep.subr.mxu0 0.0
        %557 = vmatpush2.msra.mxu0 0.0
        %558 = vmatprep.subr.mxu0 0.0
        %559 = vmatpush2.msra.mxu0 0.0
        %560 = vmatprep.subr.mxu0 0.0
        %561 = vmatpush2.msra.mxu0 0.0
        %562 = vmatprep.mubr.f32.mxu0 0.0
        %563 = vmatmul.mubr.f32.gmra.mxu0 %v359
        %v564 = vpop.f32.mrf.mxu0
        %v565 = vadd.f32 %v423, %v564
        %v566 = vpop.f32.mrf.mxu0
        %567 = vdwg.mxu0
        %v568 = vld [vmem:[%s4] sm:$0xff]
        %v569 = vld [vmem:[%s4 + $0x8] sm:$0xff]
        %v570 = vld [vmem:[%s4 + $0x10] sm:$0xff]
        %v571 = vld [vmem:[%s4 + $0x18] sm:$0xff]
        %v572 = vld [vmem:[%s4 + $0x20] sm:$0xff]
        %v573 = vld [vmem:[%s4 + $0x28] sm:$0xff]
        %v574 = vld [vmem:[%s4 + $0x30] sm:$0xff]
        %v575 = vld [vmem:[%s4 + $0x38] sm:$0xff]
        %v576 = vld [vmem:[%s4 + $0x40] sm:$0xff]
        %v577 = vld [vmem:[%s4 + $0x48] sm:$0xff]
        %v578 = vld [vmem:[%s4 + $0x50] sm:$0xff]
        %v579 = vld [vmem:[%s4 + $0x58] sm:$0xff]
        %v580 = vld [vmem:[%s4 + $0x60] sm:$0xff]
        %v581 = vld [vmem:[%s4 + $0x68] sm:$0xff]
        %v582 = vld [vmem:[%s4 + $0x70] sm:$0xff]
        %v583 = vld [vmem:[%s4 + $0x78] sm:$0xff]
        %v584 = vld [vmem:[%s4 + $0x80] sm:$0xff]
        %v585 = vld [vmem:[%s4 + $0x88] sm:$0xff]
        %v586 = vld [vmem:[%s4 + $0x90] sm:$0xff]
        %v587 = vld [vmem:[%s4 + $0x98] sm:$0xff]
        %v588 = vld [vmem:[%s4 + $0xa0] sm:$0xff]
        %v589 = vld [vmem:[%s4 + $0xa8] sm:$0xff]
        %v590 = vld [vmem:[%s4 + $0xb0] sm:$0xff]
        %v591 = vld [vmem:[%s4 + $0xb8] sm:$0xff]
        %v592 = vld [vmem:[%s4 + $0xc0] sm:$0xff]
        %v593 = vld [vmem:[%s4 + $0xc8] sm:$0xff]
        %v594 = vld [vmem:[%s4 + $0xd0] sm:$0xff]
        %v595 = vld [vmem:[%s4 + $0xd8] sm:$0xff]
        %v596 = vld [vmem:[%s4 + $0xe0] sm:$0xff]
        %v597 = vld [vmem:[%s4 + $0xe8] sm:$0xff]
        %v598 = vld [vmem:[%s4 + $0xf0] sm:$0xff]
        %v599 = vld [vmem:[%s4 + $0xf8] sm:$0xff]
        %v600 = vld [vmem:[%s4 + $0x100] sm:$0xff]
        %v601 = vld [vmem:[%s4 + $0x108] sm:$0xff]
        %v602 = vld [vmem:[%s4 + $0x110] sm:$0xff]
        %v603 = vld [vmem:[%s4 + $0x118] sm:$0xff]
        %v604 = vld [vmem:[%s4 + $0x120] sm:$0xff]
        %v605 = vld [vmem:[%s4 + $0x128] sm:$0xff]
        %v606 = vld [vmem:[%s4 + $0x130] sm:$0xff]
        %v607 = vld [vmem:[%s4 + $0x138] sm:$0xff]
        %v608 = vld [vmem:[%s4 + $0x140] sm:$0xff]
        %v609 = vld [vmem:[%s4 + $0x148] sm:$0xff]
        %v610 = vld [vmem:[%s4 + $0x150] sm:$0xff]
        %v611 = vld [vmem:[%s4 + $0x158] sm:$0xff]
        %v612 = vld [vmem:[%s4 + $0x160] sm:$0xff]
        %v613 = vld [vmem:[%s4 + $0x168] sm:$0xff]
        %v614 = vld [vmem:[%s4 + $0x170] sm:$0xff]
        %v615 = vld [vmem:[%s4 + $0x178] sm:$0xff]
        %v616 = vld [vmem:[%s5] sm:$0x7]
        %v618 = vlaneseq
        %v619 = vshrl.u32 %v618, 7
        %v620 = vsub.s32 0, %v619
        %v621 = vrot.slane %v616, %v620
        %v622 = vlaneseq
        %v623 = vshrl.u32 %v622, 7
        %v624 = vsub.s32 1, %v623
        %v625 = vrot.slane %v616, %v624
        %v626 = vlaneseq
        %v627 = vshrl.u32 %v626, 7
        %v628 = vsub.s32 2, %v627
        %v629 = vrot.slane %v616, %v628
        %633 = vmatprep.subr.mxu0 %v614
        %634 = vmatpush1.msra.mxu0 %v613
        %635 = vmatprep.subr.mxu0 %v611
        %636 = vmatpush1.msra.mxu0 %v610
        %637 = vmatprep.subr.mxu0 %v608
        %638 = vmatpush1.msra.mxu0 %v607
        %639 = vmatprep.subr.mxu0 %v605
        %640 = vmatpush1.msra.mxu0 %v604
        %641 = vmatprep.subr.mxu0 %v602
        %642 = vmatpush1.msra.mxu0 %v601
        %643 = vmatprep.subr.mxu0 %v599
        %644 = vmatpush1.msra.mxu0 %v598
        %645 = vmatprep.subr.mxu0 %v596
        %646 = vmatpush1.msra.mxu0 %v595
        %647 = vmatprep.subr.mxu0 %v593
        %648 = vmatpush1.msra.mxu0 %v592
        %649 = vmatprep.subr.mxu0 %v590
        %650 = vmatpush1.msra.mxu0 %v589
        %651 = vmatprep.subr.mxu0 %v587
        %652 = vmatpush1.msra.mxu0 %v586
        %653 = vmatprep.subr.mxu0 %v584
        %654 = vmatpush1.msra.mxu0 %v583
        %655 = vmatprep.subr.mxu0 %v581
        %656 = vmatpush1.msra.mxu0 %v580
        %657 = vmatprep.subr.mxu0 %v578
        %658 = vmatpush1.msra.mxu0 %v577
        %659 = vmatprep.subr.mxu0 %v575
        %660 = vmatpush1.msra.mxu0 %v574
        %661 = vmatprep.subr.mxu0 %v572
        %662 = vmatpush1.msra.mxu0 %v571
        %663 = vmatprep.subr.mxu0 %v569
        %664 = vmatpush1.msra.mxu0 %v568
        %665 = vmatprep.subr.mxu0 0.0
        %666 = vmatpush2.msra.mxu0 0.0
        %667 = vmatprep.subr.mxu0 0.0
        %668 = vmatpush2.msra.mxu0 0.0
        %669 = vmatprep.subr.mxu0 0.0
        %670 = vmatpush2.msra.mxu0 0.0
        %671 = vmatprep.subr.mxu0 0.0
        %672 = vmatpush2.msra.mxu0 0.0
        %673 = vmatprep.subr.mxu0 0.0
        %674 = vmatpush2.msra.mxu0 0.0
        %675 = vmatprep.subr.mxu0 0.0
        %676 = vmatpush2.msra.mxu0 0.0
        %677 = vmatprep.subr.mxu0 0.0
        %678 = vmatpush2.msra.mxu0 0.0
        %679 = vmatprep.subr.mxu0 0.0
        %680 = vmatpush2.msra.mxu0 0.0
        %681 = vmatprep.subr.mxu0 0.0
        %682 = vmatpush2.msra.mxu0 0.0
        %683 = vmatprep.subr.mxu0 0.0
        %684 = vmatpush2.msra.mxu0 0.0
        %685 = vmatprep.subr.mxu0 0.0
        %686 = vmatpush2.msra.mxu0 0.0
        %687 = vmatprep.subr.mxu0 0.0
        %688 = vmatpush2.msra.mxu0 0.0
        %689 = vmatprep.subr.mxu0 0.0
        %690 = vmatpush2.msra.mxu0 0.0
        %691 = vmatprep.subr.mxu0 0.0
        %692 = vmatpush2.msra.mxu0 0.0
        %693 = vmatprep.subr.mxu0 0.0
        %694 = vmatpush2.msra.mxu0 0.0
        %695 = vmatprep.subr.mxu0 0.0
        %696 = vmatpush2.msra.mxu0 0.0
        %697 = vmatprep.mubr.f32.mxu0 0.0
        %698 = vmatmul.mubr.f32.gmra.mxu0 %v360
        %v699 = vpop.f32.mrf.mxu0
        %v700 = vadd.f32 %v621, %v699
        %v701 = vpop.f32.mrf.mxu0
        %v702 = vadd.f32 %v625, %v701
        %703 = vmatprep.mubr.f32.mxu0 0.0
        %704 = vmatmul.mubr.f32.gmra.mxu0 %v361
        %v705 = vpop.f32.mrf.mxu0
        %v706 = vadd.f32 %v621, %v705
        %v707 = vpop.f32.mrf.mxu0
        %v708 = vadd.f32 %v625, %v707
        %709 = vdwg.mxu0
        %710 = vmatprep.subr.mxu0 0.0
        %711 = vmatpush1.msra.mxu0 %v615
        %712 = vmatprep.subr.mxu0 0.0
        %713 = vmatpush1.msra.mxu0 %v612
        %714 = vmatprep.subr.mxu0 0.0
        %715 = vmatpush1.msra.mxu0 %v609
        %716 = vmatprep.subr.mxu0 0.0
        %717 = vmatpush1.msra.mxu0 %v606
        %718 = vmatprep.subr.mxu0 0.0
        %719 = vmatpush1.msra.mxu0 %v603
        %720 = vmatprep.subr.mxu0 0.0
        %721 = vmatpush1.msra.mxu0 %v600
        %722 = vmatprep.subr.mxu0 0.0
        %723 = vmatpush1.msra.mxu0 %v597
        %724 = vmatprep.subr.mxu0 0.0
        %725 = vmatpush1.msra.mxu0 %v594
        %726 = vmatprep.subr.mxu0 0.0
        %727 = vmatpush1.msra.mxu0 %v591
        %728 = vmatprep.subr.mxu0 0.0
        %729 = vmatpush1.msra.mxu0 %v588
        %730 = vmatprep.subr.mxu0 0.0
        %731 = vmatpush1.msra.mxu0 %v585
        %732 = vmatprep.subr.mxu0 0.0
        %733 = vmatpush1.msra.mxu0 %v582
        %734 = vmatprep.subr.mxu0 0.0
        %735 = vmatpush1.msra.mxu0 %v579
        %736 = vmatprep.subr.mxu0 0.0
        %737 = vmatpush1.msra.mxu0 %v576
        %738 = vmatprep.subr.mxu0 0.0
        %739 = vmatpush1.msra.mxu0 %v573
        %740 = vmatprep.subr.mxu0 0.0
        %741 = vmatpush1.msra.mxu0 %v570
        %742 = vmatprep.subr.mxu0 0.0
        %743 = vmatpush2.msra.mxu0 0.0
        %744 = vmatprep.subr.mxu0 0.0
        %745 = vmatpush2.msra.mxu0 0.0
        %746 = vmatprep.subr.mxu0 0.0
        %747 = vmatpush2.msra.mxu0 0.0
        %748 = vmatprep.subr.mxu0 0.0
        %749 = vmatpush2.msra.mxu0 0.0
        %750 = vmatprep.subr.mxu0 0.0
        %751 = vmatpush2.msra.mxu0 0.0
        %752 = vmatprep.subr.mxu0 0.0
        %753 = vmatpush2.msra.mxu0 0.0
        %754 = vmatprep.subr.mxu0 0.0
        %755 = vmatpush2.msra.mxu0 0.0
        %756 = vmatprep.subr.mxu0 0.0
        %757 = vmatpush2.msra.mxu0 0.0
        %758 = vmatprep.subr.mxu0 0.0
        %759 = vmatpush2.msra.mxu0 0.0
        %760 = vmatprep.subr.mxu0 0.0
        %761 = vmatpush2.msra.mxu0 0.0
        %762 = vmatprep.subr.mxu0 0.0
        %763 = vmatpush2.msra.mxu0 0.0
        %764 = vmatprep.subr.mxu0 0.0
        %765 = vmatpush2.msra.mxu0 0.0
        %766 = vmatprep.subr.mxu0 0.0
        %767 = vmatpush2.msra.mxu0 0.0
        %768 = vmatprep.subr.mxu0 0.0
        %769 = vmatpush2.msra.mxu0 0.0
        %770 = vmatprep.subr.mxu0 0.0
        %771 = vmatpush2.msra.mxu0 0.0
        %772 = vmatprep.subr.mxu0 0.0
        %773 = vmatpush2.msra.mxu0 0.0
        %774 = vmatprep.mubr.f32.mxu0 0.0
        %775 = vmatmul.mubr.f32.gmra.mxu0 %v360
        %v776 = vpop.f32.mrf.mxu0
        %v777 = vadd.f32 %v629, %v776
        %v778 = vpop.f32.mrf.mxu0
        %779 = vmatprep.mubr.f32.mxu0 0.0
        %780 = vmatmul.mubr.f32.gmra.mxu0 %v361
        %v781 = vpop.f32.mrf.mxu0
        %v782 = vadd.f32 %v629, %v781
        %v783 = vpop.f32.mrf.mxu0
        %784 = vdwg.mxu0
        %785 = vmatprep.subr.mxu0 0.0
        %786 = vmatpush1.xpose.msra.mxu0 0.0
        %787 = vmatprep.subr.mxu0 0.0
        %788 = vmatpush1.xpose.msra.mxu0 0.0
        %789 = vmatprep.subr.mxu0 0.0
        %790 = vmatpush1.xpose.msra.mxu0 0.0
        %791 = vmatprep.subr.mxu0 0.0
        %792 = vmatpush1.xpose.msra.mxu0 0.0
        %793 = vmatprep.subr.mxu0 0.0
        %794 = vmatpush1.xpose.msra.mxu0 0.0
        %795 = vmatprep.subr.mxu0 0.0
        %796 = vmatpush1.xpose.msra.mxu0 0.0
        %797 = vmatprep.subr.mxu0 0.0
        %798 = vmatpush1.xpose.msra.mxu0 0.0
        %799 = vmatprep.subr.mxu0 0.0
        %800 = vmatpush1.xpose.msra.mxu0 0.0
        %801 = vmatprep.subr.mxu0 0.0
        %802 = vmatpush1.xpose.msra.mxu0 0.0
        %803 = vmatprep.subr.mxu0 0.0
        %804 = vmatpush1.xpose.msra.mxu0 0.0
        %805 = vmatprep.subr.mxu0 0.0
        %806 = vmatpush1.xpose.msra.mxu0 0.0
        %807 = vmatprep.subr.mxu0 0.0
        %808 = vmatpush1.xpose.msra.mxu0 0.0
        %809 = vmatprep.subr.mxu0 0.0
        %810 = vmatpush1.xpose.msra.mxu0 0.0
        %811 = vmatprep.subr.mxu0 0.0
        %812 = vmatpush1.xpose.msra.mxu0 0.0
        %813 = vmatprep.subr.mxu0 0.0
        %814 = vmatpush1.xpose.msra.mxu0 %v706
        %815 = vmatprep.subr.mxu0 0.0
        %816 = vmatpush1.xpose.msra.mxu0 %v700
        %817 = vmatprep.subr.mxu0 0.0
        %818 = vmatpush2.xpose.msra.mxu0 0.0
        %819 = vmatprep.subr.mxu0 0.0
        %820 = vmatpush2.xpose.msra.mxu0 0.0
        %821 = vmatprep.subr.mxu0 0.0
        %822 = vmatpush2.xpose.msra.mxu0 0.0
        %823 = vmatprep.subr.mxu0 0.0
        %824 = vmatpush2.xpose.msra.mxu0 0.0
        %825 = vmatprep.subr.mxu0 0.0
        %826 = vmatpush2.xpose.msra.mxu0 0.0
        %827 = vmatprep.subr.mxu0 0.0
        %828 = vmatpush2.xpose.msra.mxu0 0.0
        %829 = vmatprep.subr.mxu0 0.0
        %830 = vmatpush2.xpose.msra.mxu0 0.0
        %831 = vmatprep.subr.mxu0 0.0
        %832 = vmatpush2.xpose.msra.mxu0 0.0
        %833 = vmatprep.subr.mxu0 0.0
        %834 = vmatpush2.xpose.msra.mxu0 0.0
        %835 = vmatprep.subr.mxu0 0.0
        %836 = vmatpush2.xpose.msra.mxu0 0.0
        %837 = vmatprep.subr.mxu0 0.0
        %838 = vmatpush2.xpose.msra.mxu0 0.0
        %839 = vmatprep.subr.mxu0 0.0
        %840 = vmatpush2.xpose.msra.mxu0 0.0
        %841 = vmatprep.subr.mxu0 0.0
        %842 = vmatpush2.xpose.msra.mxu0 0.0
        %843 = vmatprep.subr.mxu0 0.0
        %844 = vmatpush2.xpose.msra.mxu0 0.0
        %845 = vmatprep.subr.mxu0 0.0
        %846 = vmatpush2.xpose.msra.mxu0 0.0
        %847 = vmatprep.subr.mxu0 0.0
        %848 = vmatpush2.xpose.msra.mxu0 0.0
        %849 = vmatprep.mubr.f32.mxu0 0.0
        %850 = vmatmul.mubr.f32.gmra.mxu0 %v494
        %v851 = vpop.f32.mrf.mxu0
        %v852 = vadd.f32 0.0, %v851
        %v853 = vpop.f32.mrf.mxu0
        %854 = vdwg.mxu0
        %v855 = vmul.f32 %v852, 0.088388346
        %vm856 = vcmask 130048
        %v857 = vsel %vm856, %v855, -inf
        %858 = vmax.xlane.f32.xlu0 %v857
        %v859 = vpop.xlane.xlu0 %858
        %v860 = vsub.f32 %v855, %v859
        %v861 = vmul.f32 %v860, 1.442695
        %v862 = vpow.pop %v861
        %v863 = vsel %vm856, %v862, 0.0
        %864 = vadd.xlane.f32.xlu0 %v863
        %v865 = vpop.xlane.xlu0 %864
        %v866 = vrcp.pop %v865
        %v867 = vmul.f32 %v862, %v866
        %v869 = vsel %vm856, %v867, 0
        %871 = vmatprep.subr.mxu0 0.0
        %872 = vmatpush1.msra.mxu0 0.0
        %873 = vmatprep.subr.mxu0 0.0
        %874 = vmatpush1.msra.mxu0 0.0
        %875 = vmatprep.subr.mxu0 0.0
        %876 = vmatpush1.msra.mxu0 0.0
        %877 = vmatprep.subr.mxu0 0.0
        %878 = vmatpush1.msra.mxu0 0.0
        %879 = vmatprep.subr.mxu0 0.0
        %880 = vmatpush1.msra.mxu0 0.0
        %881 = vmatprep.subr.mxu0 0.0
        %882 = vmatpush1.msra.mxu0 0.0
        %883 = vmatprep.subr.mxu0 0.0
        %884 = vmatpush1.msra.mxu0 0.0
        %885 = vmatprep.subr.mxu0 0.0
        %886 = vmatpush1.msra.mxu0 0.0
        %887 = vmatprep.subr.mxu0 0.0
        %888 = vmatpush1.msra.mxu0 0.0
        %889 = vmatprep.subr.mxu0 0.0
        %890 = vmatpush1.msra.mxu0 0.0
        %891 = vmatprep.subr.mxu0 0.0
        %892 = vmatpush1.msra.mxu0 0.0
        %893 = vmatprep.subr.mxu0 0.0
        %894 = vmatpush1.msra.mxu0 0.0
        %895 = vmatprep.subr.mxu0 0.0
        %896 = vmatpush1.msra.mxu0 0.0
        %897 = vmatprep.subr.mxu0 0.0
        %898 = vmatpush1.msra.mxu0 0.0
        %899 = vmatprep.subr.mxu0 0.0
        %900 = vmatpush1.msra.mxu0 %v708
        %901 = vmatprep.subr.mxu0 0.0
        %902 = vmatpush1.msra.mxu0 %v702
        %903 = vmatprep.subr.mxu0 0.0
        %904 = vmatpush2.msra.mxu0 0.0
        %905 = vmatprep.subr.mxu0 0.0
        %906 = vmatpush2.msra.mxu0 0.0
        %907 = vmatprep.subr.mxu0 0.0
        %908 = vmatpush2.msra.mxu0 0.0
        %909 = vmatprep.subr.mxu0 0.0
        %910 = vmatpush2.msra.mxu0 0.0
        %911 = vmatprep.subr.mxu0 0.0
        %912 = vmatpush2.msra.mxu0 0.0
        %913 = vmatprep.subr.mxu0 0.0
        %914 = vmatpush2.msra.mxu0 0.0
        %915 = vmatprep.subr.mxu0 0.0
        %916 = vmatpush2.msra.mxu0 0.0
        %917 = vmatprep.subr.mxu0 0.0
        %918 = vmatpush2.msra.mxu0 0.0
        %919 = vmatprep.subr.mxu0 0.0
        %920 = vmatpush2.msra.mxu0 0.0
        %921 = vmatprep.subr.mxu0 0.0
        %922 = vmatpush2.msra.mxu0 0.0
        %923 = vmatprep.subr.mxu0 0.0
        %924 = vmatpush2.msra.mxu0 0.0
        %925 = vmatprep.subr.mxu0 0.0
        %926 = vmatpush2.msra.mxu0 0.0
        %927 = vmatprep.subr.mxu0 0.0
        %928 = vmatpush2.msra.mxu0 0.0
        %929 = vmatprep.subr.mxu0 0.0
        %930 = vmatpush2.msra.mxu0 0.0
        %931 = vmatprep.subr.mxu0 0.0
        %932 = vmatpush2.msra.mxu0 0.0
        %933 = vmatprep.subr.mxu0 0.0
        %934 = vmatpush2.msra.mxu0 0.0
        %935 = vmatprep.mubr.f32.mxu0 0.0
        %936 = vmatmul.mubr.f32.gmra.mxu0 %v869
        %v937 = vpop.f32.mrf.mxu0
        %v938 = vadd.f32 0.0, %v937
        %v939 = vpop.f32.mrf.mxu0
        %940 = vdwg.mxu0
        %941 = vmatprep.subr.mxu0 0.0
        %942 = vmatpush1.xpose.msra.mxu0 0.0
        %943 = vmatprep.subr.mxu0 0.0
        %944 = vmatpush1.xpose.msra.mxu0 0.0
        %945 = vmatprep.subr.mxu0 0.0
        %946 = vmatpush1.xpose.msra.mxu0 0.0
        %947 = vmatprep.subr.mxu0 0.0
        %948 = vmatpush1.xpose.msra.mxu0 0.0
        %949 = vmatprep.subr.mxu0 0.0
        %950 = vmatpush1.xpose.msra.mxu0 0.0
        %951 = vmatprep.subr.mxu0 0.0
        %952 = vmatpush1.xpose.msra.mxu0 0.0
        %953 = vmatprep.subr.mxu0 0.0
        %954 = vmatpush1.xpose.msra.mxu0 0.0
        %955 = vmatprep.subr.mxu0 0.0
        %956 = vmatpush1.xpose.msra.mxu0 0.0
        %957 = vmatprep.subr.mxu0 0.0
        %958 = vmatpush1.xpose.msra.mxu0 0.0
        %959 = vmatprep.subr.mxu0 0.0
        %960 = vmatpush1.xpose.msra.mxu0 0.0
        %961 = vmatprep.subr.mxu0 0.0
        %962 = vmatpush1.xpose.msra.mxu0 0.0
        %963 = vmatprep.subr.mxu0 0.0
        %964 = vmatpush1.xpose.msra.mxu0 0.0
        %965 = vmatprep.subr.mxu0 0.0
        %966 = vmatpush1.xpose.msra.mxu0 0.0
        %967 = vmatprep.subr.mxu0 0.0
        %968 = vmatpush1.xpose.msra.mxu0 0.0
        %969 = vmatprep.subr.mxu0 0.0
        %970 = vmatpush1.xpose.msra.mxu0 0.0
        %971 = vmatprep.subr.mxu0 0.0
        %972 = vmatpush1.xpose.msra.mxu0 %v496
        %973 = vmatprep.subr.mxu0 0.0
        %974 = vmatpush2.xpose.msra.mxu0 0.0
        %975 = vmatprep.subr.mxu0 0.0
        %976 = vmatpush2.xpose.msra.mxu0 0.0
        %977 = vmatprep.subr.mxu0 0.0
        %978 = vmatpush2.xpose.msra.mxu0 0.0
        %979 = vmatprep.subr.mxu0 0.0
        %980 = vmatpush2.xpose.msra.mxu0 0.0
        %981 = vmatprep.subr.mxu0 0.0
        %982 = vmatpush2.xpose.msra.mxu0 0.0
        %983 = vmatprep.subr.mxu0 0.0
        %984 = vmatpush2.xpose.msra.mxu0 0.0
        %985 = vmatprep.subr.mxu0 0.0
        %986 = vmatpush2.xpose.msra.mxu0 0.0
        %987 = vmatprep.subr.mxu0 0.0
        %988 = vmatpush2.xpose.msra.mxu0 0.0
        %989 = vmatprep.subr.mxu0 0.0
        %990 = vmatpush2.xpose.msra.mxu0 0.0
        %991 = vmatprep.subr.mxu0 0.0
        %992 = vmatpush2.xpose.msra.mxu0 0.0
        %993 = vmatprep.subr.mxu0 0.0
        %994 = vmatpush2.xpose.msra.mxu0 0.0
        %995 = vmatprep.subr.mxu0 0.0
        %996 = vmatpush2.xpose.msra.mxu0 0.0
        %997 = vmatprep.subr.mxu0 0.0
        %998 = vmatpush2.xpose.msra.mxu0 0.0
        %999 = vmatprep.subr.mxu0 0.0
        %1000 = vmatpush2.xpose.msra.mxu0 0.0
        %1001 = vmatprep.subr.mxu0 0.0
        %1002 = vmatpush2.xpose.msra.mxu0 0.0
        %1003 = vmatprep.subr.mxu0 0.0
        %1004 = vmatpush2.xpose.msra.mxu0 0.0
        %1005 = vmatprep.mubr.f32.mxu0 0.0
        %1006 = vmatmul.mubr.f32.gmra.mxu0 %v777
        %v1007 = vpop.f32.mrf.mxu0
        %v1008 = vadd.f32 0.0, %v1007
        %v1009 = vpop.f32.mrf.mxu0
        %1010 = vmatprep.mubr.f32.mxu0 0.0
        %1011 = vmatmul.mubr.f32.gmra.mxu0 %v782
        %v1012 = vpop.f32.mrf.mxu0
        %v1013 = vadd.f32 0.0, %v1012
        %v1014 = vpop.f32.mrf.mxu0
        %1015 = vdwg.mxu0
        %v1016 = vmul.f32 %v1008, 0.088388346
        %v1017 = vmul.f32 %v1013, 0.088388346
        %vm1018 = vcmask 64512
        %v1019 = vsel %vm1018, %v1016, -inf
        %1020 = vmax.xlane.f32.xlu0 %v1019
        %v1021 = vpop.xlane.xlu0 %1020
        %v1022 = vsel %vm1018, %v1017, -inf
        %1023 = vmax.xlane.f32.xlu0 %v1022
        %v1024 = vpop.xlane.xlu0 %1023
        %v1025 = vsub.f32 %v1016, %v1021
        %v1026 = vsub.f32 %v1017, %v1024
        %v1027 = vmul.f32 %v1025, 1.442695
        %v1028 = vpow.pop %v1027
        %v1029 = vmul.f32 %v1026, 1.442695
        %v1030 = vpow.pop %v1029
        %v1031 = vsel %vm1018, %v1028, 0.0
        %1032 = vadd.xlane.f32.xlu0 %v1031
        %v1033 = vpop.xlane.xlu0 %1032
        %v1034 = vsel %vm1018, %v1030, 0.0
        %1035 = vadd.xlane.f32.xlu0 %v1034
        %v1036 = vpop.xlane.xlu0 %1035
        %v1037 = vrcp.pop %v1033
        %v1038 = vmul.f32 %v1028, %v1037
        %v1039 = vrcp.pop %v1036
        %v1040 = vmul.f32 %v1030, %v1039
        %v1042 = vsel %vm1018, %v1038, 0
        %v1045 = vsel %vm1018, %v1040, 0
        %1047 = vmatprep.subr.mxu0 0.0
        %1048 = vmatpush1.msra.mxu0 0.0
        %1049 = vmatprep.subr.mxu0 0.0
        %1050 = vmatpush1.msra.mxu0 0.0
        %1051 = vmatprep.subr.mxu0 0.0
        %1052 = vmatpush1.msra.mxu0 0.0
        %1053 = vmatprep.subr.mxu0 0.0
        %1054 = vmatpush1.msra.mxu0 0.0
        %1055 = vmatprep.subr.mxu0 0.0
        %1056 = vmatpush1.msra.mxu0 0.0
        %1057 = vmatprep.subr.mxu0 0.0
        %1058 = vmatpush1.msra.mxu0 0.0
        %1059 = vmatprep.subr.mxu0 0.0
        %1060 = vmatpush1.msra.mxu0 0.0
        %1061 = vmatprep.subr.mxu0 0.0
        %1062 = vmatpush1.msra.mxu0 0.0
        %1063 = vmatprep.subr.mxu0 0.0
        %1064 = vmatpush1.msra.mxu0 0.0
        %1065 = vmatprep.subr.mxu0 0.0
        %1066 = vmatpush1.msra.mxu0 0.0
        %1067 = vmatprep.subr.mxu0 0.0
        %1068 = vmatpush1.msra.mxu0 0.0
        %1069 = vmatprep.subr.mxu0 0.0
        %1070 = vmatpush1.msra.mxu0 0.0
        %1071 = vmatprep.subr.mxu0 0.0
        %1072 = vmatpush1.msra.mxu0 0.0
        %1073 = vmatprep.subr.mxu0 0.0
        %1074 = vmatpush1.msra.mxu0 0.0
        %1075 = vmatprep.subr.mxu0 0.0
        %1076 = vmatpush1.msra.mxu0 0.0
        %1077 = vmatprep.subr.mxu0 0.0
        %1078 = vmatpush1.msra.mxu0 %v565
        %1079 = vmatprep.subr.mxu0 0.0
        %1080 = vmatpush2.msra.mxu0 0.0
        %1081 = vmatprep.subr.mxu0 0.0
        %1082 = vmatpush2.msra.mxu0 0.0
        %1083 = vmatprep.subr.mxu0 0.0
        %1084 = vmatpush2.msra.mxu0 0.0
        %1085 = vmatprep.subr.mxu0 0.0
        %1086 = vmatpush2.msra.mxu0 0.0
        %1087 = vmatprep.subr.mxu0 0.0
        %1088 = vmatpush2.msra.mxu0 0.0
        %1089 = vmatprep.subr.mxu0 0.0
        %1090 = vmatpush2.msra.mxu0 0.0
        %1091 = vmatprep.subr.mxu0 0.0
        %1092 = vmatpush2.msra.mxu0 0.0
        %1093 = vmatprep.subr.mxu0 0.0
        %1094 = vmatpush2.msra.mxu0 0.0
        %1095 = vmatprep.subr.mxu0 0.0
        %1096 = vmatpush2.msra.mxu0 0.0
        %1097 = vmatprep.subr.mxu0 0.0
        %1098 = vmatpush2.msra.mxu0 0.0
        %1099 = vmatprep.subr.mxu0 0.0
        %1100 = vmatpush2.msra.mxu0 0.0
        %1101 = vmatprep.subr.mxu0 0.0
        %1102 = vmatpush2.msra.mxu0 0.0
        %1103 = vmatprep.subr.mxu0 0.0
        %1104 = vmatpush2.msra.mxu0 0.0
        %1105 = vmatprep.subr.mxu0 0.0
        %1106 = vmatpush2.msra.mxu0 0.0
        %1107 = vmatprep.subr.mxu0 0.0
        %1108 = vmatpush2.msra.mxu0 0.0
        %1109 = vmatprep.subr.mxu0 0.0
        %1110 = vmatpush2.msra.mxu0 0.0
        %1111 = vmatprep.mubr.f32.mxu0 0.0
        %1112 = vmatmul.mubr.f32.gmra.mxu0 %v1042
        %v1113 = vpop.f32.mrf.mxu0
        %v1114 = vadd.f32 0.0, %v1113
        %v1115 = vpop.f32.mrf.mxu0
        %1116 = vmatprep.mubr.f32.mxu0 0.0
        %1117 = vmatmul.mubr.f32.gmra.mxu0 %v1045
        %v1118 = vpop.f32.mrf.mxu0
        %v1119 = vadd.f32 0.0, %v1118
        %v1120 = vpop.f32.mrf.mxu0
        %1121 = vdwg.mxu0
        %v1122 = vld [vmem:[%s6] sm:$0xff]
        %v1123 = vld [vmem:[%s6 + $0x8] sm:$0xff]
        %v1124 = vld [vmem:[%s6 + $0x10] sm:$0xff]
        %v1125 = vld [vmem:[%s6 + $0x18] sm:$0xff]
        %v1126 = vld [vmem:[%s6 + $0x20] sm:$0xff]
        %v1127 = vld [vmem:[%s6 + $0x28] sm:$0xff]
        %v1128 = vld [vmem:[%s6 + $0x30] sm:$0xff]
        %v1129 = vld [vmem:[%s6 + $0x38] sm:$0xff]
        %v1130 = vld [vmem:[%s6 + $0x40] sm:$0xff]
        %v1131 = vld [vmem:[%s6 + $0x48] sm:$0xff]
        %v1132 = vld [vmem:[%s6 + $0x50] sm:$0xff]
        %v1133 = vld [vmem:[%s6 + $0x58] sm:$0xff]
        %v1134 = vld [vmem:[%s6 + $0x60] sm:$0xff]
        %v1135 = vld [vmem:[%s6 + $0x68] sm:$0xff]
        %v1136 = vld [vmem:[%s6 + $0x70] sm:$0xff]
        %v1137 = vld [vmem:[%s6 + $0x78] sm:$0xff]
        %v1138 = vld [vmem:[%s7] sm:$0x1]
        %v1140 = vlaneseq
        %v1141 = vshrl.u32 %v1140, 7
        %v1142 = vsub.s32 0, %v1141
        %v1143 = vrot.slane %v1138, %v1142
        %1145 = vmatprep.subr.mxu0 0.0
        %1146 = vmatpush1.msra.mxu0 %v1137
        %1147 = vmatprep.subr.mxu0 0.0
        %1148 = vmatpush1.msra.mxu0 %v1136
        %1149 = vmatprep.subr.mxu0 0.0
        %1150 = vmatpush1.msra.mxu0 %v1135
        %1151 = vmatprep.subr.mxu0 0.0
        %1152 = vmatpush1.msra.mxu0 %v1134
        %1153 = vmatprep.subr.mxu0 0.0
        %1154 = vmatpush1.msra.mxu0 %v1133
        %1155 = vmatprep.subr.mxu0 0.0
        %1156 = vmatpush1.msra.mxu0 %v1132
        %1157 = vmatprep.subr.mxu0 0.0
        %1158 = vmatpush1.msra.mxu0 %v1131
        %1159 = vmatprep.subr.mxu0 0.0
        %1160 = vmatpush1.msra.mxu0 %v1130
        %1161 = vmatprep.subr.mxu0 0.0
        %1162 = vmatpush1.msra.mxu0 %v1129
        %1163 = vmatprep.subr.mxu0 0.0
        %1164 = vmatpush1.msra.mxu0 %v1128
        %1165 = vmatprep.subr.mxu0 0.0
        %1166 = vmatpush1.msra.mxu0 %v1127
        %1167 = vmatprep.subr.mxu0 0.0
        %1168 = vmatpush1.msra.mxu0 %v1126
        %1169 = vmatprep.subr.mxu0 0.0
        %1170 = vmatpush1.msra.mxu0 %v1125
        %1171 = vmatprep.subr.mxu0 0.0
        %1172 = vmatpush1.msra.mxu0 %v1124
        %1173 = vmatprep.subr.mxu0 0.0
        %1174 = vmatpush1.msra.mxu0 %v1123
        %1175 = vmatprep.subr.mxu0 0.0
        %1176 = vmatpush1.msra.mxu0 %v1122
        %1177 = vmatprep.subr.mxu0 0.0
        %1178 = vmatpush2.msra.mxu0 0.0
        %1179 = vmatprep.subr.mxu0 0.0
        %1180 = vmatpush2.msra.mxu0 0.0
        %1181 = vmatprep.subr.mxu0 0.0
        %1182 = vmatpush2.msra.mxu0 0.0
        %1183 = vmatprep.subr.mxu0 0.0
        %1184 = vmatpush2.msra.mxu0 0.0
        %1185 = vmatprep.subr.mxu0 0.0
        %1186 = vmatpush2.msra.mxu0 0.0
        %1187 = vmatprep.subr.mxu0 0.0
        %1188 = vmatpush2.msra.mxu0 0.0
        %1189 = vmatprep.subr.mxu0 0.0
        %1190 = vmatpush2.msra.mxu0 0.0
        %1191 = vmatprep.subr.mxu0 0.0
        %1192 = vmatpush2.msra.mxu0 0.0
        %1193 = vmatprep.subr.mxu0 0.0
        %1194 = vmatpush2.msra.mxu0 0.0
        %1195 = vmatprep.subr.mxu0 0.0
        %1196 = vmatpush2.msra.mxu0 0.0
        %1197 = vmatprep.subr.mxu0 0.0
        %1198 = vmatpush2.msra.mxu0 0.0
        %1199 = vmatprep.subr.mxu0 0.0
        %1200 = vmatpush2.msra.mxu0 0.0
        %1201 = vmatprep.subr.mxu0 0.0
        %1202 = vmatpush2.msra.mxu0 0.0
        %1203 = vmatprep.subr.mxu0 0.0
        %1204 = vmatpush2.msra.mxu0 0.0
        %1205 = vmatprep.subr.mxu0 0.0
        %1206 = vmatpush2.msra.mxu0 0.0
        %1207 = vmatprep.subr.mxu0 0.0
        %1208 = vmatpush2.msra.mxu0 0.0
        %1209 = vmatprep.mubr.f32.mxu0 0.0
        %1210 = vmatmul.mubr.f32.gmra.mxu0 %v938
        %v1211 = vpop.f32.mrf.mxu0
        %v1212 = vadd.f32 %v1143, %v1211
        %v1213 = vpop.f32.mrf.mxu0
        %1214 = vdwg.mxu0
        %1215 = vst [vmem:[%s342] sm:$0xff] %v1212
        %v1216 = vld [vmem:[%s6] sm:$0xff]
        %v1217 = vld [vmem:[%s6 + $0x8] sm:$0xff]
        %v1218 = vld [vmem:[%s6 + $0x10] sm:$0xff]
        %v1219 = vld [vmem:[%s6 + $0x18] sm:$0xff]
        %v1220 = vld [vmem:[%s6 + $0x20] sm:$0xff]
        %v1221 = vld [vmem:[%s6 + $0x28] sm:$0xff]
        %v1222 = vld [vmem:[%s6 + $0x30] sm:$0xff]
        %v1223 = vld [vmem:[%s6 + $0x38] sm:$0xff]
        %v1224 = vld [vmem:[%s6 + $0x40] sm:$0xff]
        %v1225 = vld [vmem:[%s6 + $0x48] sm:$0xff]
        %v1226 = vld [vmem:[%s6 + $0x50] sm:$0xff]
        %v1227 = vld [vmem:[%s6 + $0x58] sm:$0xff]
        %v1228 = vld [vmem:[%s6 + $0x60] sm:$0xff]
        %v1229 = vld [vmem:[%s6 + $0x68] sm:$0xff]
        %v1230 = vld [vmem:[%s6 + $0x70] sm:$0xff]
        %v1231 = vld [vmem:[%s6 + $0x78] sm:$0xff]
        %v1232 = vld [vmem:[%s7] sm:$0x1]
        %v1234 = vlaneseq
        %v1235 = vshrl.u32 %v1234, 7
        %v1236 = vsub.s32 0, %v1235
        %v1237 = vrot.slane %v1232, %v1236
        %1239 = vmatprep.subr.mxu0 0.0
        %1240 = vmatpush1.msra.mxu0 %v1231
        %1241 = vmatprep.subr.mxu0 0.0
        %1242 = vmatpush1.msra.mxu0 %v1230
        %1243 = vmatprep.subr.mxu0 0.0
        %1244 = vmatpush1.msra.mxu0 %v1229
        %1245 = vmatprep.subr.mxu0 0.0
        %1246 = vmatpush1.msra.mxu0 %v1228
        %1247 = vmatprep.subr.mxu0 0.0
        %1248 = vmatpush1.msra.mxu0 %v1227
        %1249 = vmatprep.subr.mxu0 0.0
        %1250 = vmatpush1.msra.mxu0 %v1226
        %1251 = vmatprep.subr.mxu0 0.0
        %1252 = vmatpush1.msra.mxu0 %v1225
        %1253 = vmatprep.subr.mxu0 0.0
        %1254 = vmatpush1.msra.mxu0 %v1224
        %1255 = vmatprep.subr.mxu0 0.0
        %1256 = vmatpush1.msra.mxu0 %v1223
        %1257 = vmatprep.subr.mxu0 0.0
        %1258 = vmatpush1.msra.mxu0 %v1222
        %1259 = vmatprep.subr.mxu0 0.0
        %1260 = vmatpush1.msra.mxu0 %v1221
        %1261 = vmatprep.subr.mxu0 0.0
        %1262 = vmatpush1.msra.mxu0 %v1220
        %1263 = vmatprep.subr.mxu0 0.0
        %1264 = vmatpush1.msra.mxu0 %v1219
        %1265 = vmatprep.subr.mxu0 0.0
        %1266 = vmatpush1.msra.mxu0 %v1218
        %1267 = vmatprep.subr.mxu0 0.0
        %1268 = vmatpush1.msra.mxu0 %v1217
        %1269 = vmatprep.subr.mxu0 0.0
        %1270 = vmatpush1.msra.mxu0 %v1216
        %1271 = vmatprep.subr.mxu0 0.0
        %1272 = vmatpush2.msra.mxu0 0.0
        %1273 = vmatprep.subr.mxu0 0.0
        %1274 = vmatpush2.msra.mxu0 0.0
        %1275 = vmatprep.subr.mxu0 0.0
        %1276 = vmatpush2.msra.mxu0 0.0
        %1277 = vmatprep.subr.mxu0 0.0
        %1278 = vmatpush2.msra.mxu0 0.0
        %1279 = vmatprep.subr.mxu0 0.0
        %1280 = vmatpush2.msra.mxu0 0.0
        %1281 = vmatprep.subr.mxu0 0.0
        %1282 = vmatpush2.msra.mxu0 0.0
        %1283 = vmatprep.subr.mxu0 0.0
        %1284 = vmatpush2.msra.mxu0 0.0
        %1285 = vmatprep.subr.mxu0 0.0
        %1286 = vmatpush2.msra.mxu0 0.0
        %1287 = vmatprep.subr.mxu0 0.0
        %1288 = vmatpush2.msra.mxu0 0.0
        %1289 = vmatprep.subr.mxu0 0.0
        %1290 = vmatpush2.msra.mxu0 0.0
        %1291 = vmatprep.subr.mxu0 0.0
        %1292 = vmatpush2.msra.mxu0 0.0
        %1293 = vmatprep.subr.mxu0 0.0
        %1294 = vmatpush2.msra.mxu0 0.0
        %1295 = vmatprep.subr.mxu0 0.0
        %1296 = vmatpush2.msra.mxu0 0.0
        %1297 = vmatprep.subr.mxu0 0.0
        %1298 = vmatpush2.msra.mxu0 0.0
        %1299 = vmatprep.subr.mxu0 0.0
        %1300 = vmatpush2.msra.mxu0 0.0
        %1301 = vmatprep.subr.mxu0 0.0
        %1302 = vmatpush2.msra.mxu0 0.0
        %1303 = vmatprep.mubr.f32.mxu0 0.0
        %1304 = vmatmul.mubr.f32.gmra.mxu0 %v1114
        %v1305 = vpop.f32.mrf.mxu0
        %v1306 = vadd.f32 %v1237, %v1305
        %v1307 = vpop.f32.mrf.mxu0
        %1308 = vmatprep.mubr.f32.mxu0 0.0
        %1309 = vmatmul.mubr.f32.gmra.mxu0 %v1119
        %v1310 = vpop.f32.mrf.mxu0
        %v1311 = vadd.f32 %v1237, %v1310
        %v1312 = vpop.f32.mrf.mxu0
        %1313 = vdwg.mxu0
        %1314 = vst [vmem:[%s349] sm:$0xff] %v1306
        %1315 = vst [vmem:[%s349 + $0x8] sm:$0xff] %v1311
        %s1316 = sand.u32 %s213, 1
        %s1317 = scalar_lea.sflag [#allocation3], %s1316
        %s1318 = sand.u32 %s213, 1
        %s1319 = smul.addr %s1318, 8
        %s1320 = scalar_lea.vmem [#allocation2], %s1319
        %s1321 = sand.u32 %s239, 1
        %s1322 = scalar_lea.sflag [#allocation5], %s1321
        %s1323 = sand.u32 %s239, 1
        %s1324 = smul.addr %s1323, 16
        %s1325 = scalar_lea.vmem [#allocation4], %s1324
        // Predicated region
        $region53: #{cross_attention_forward.1} parent=51 // pred_check
          %p1326 = pneg %p223
        $region54: #{cross_attention_forward.1} parent=51 // pred_check_branch
          %1328 = sbr.rel (%p1326) target = $region56
        $region55: #{cross_attention_forward.1} parent=51 // pred_region
          %s1330 = ssub.s32 128, 128
          %1331 = vsyncadd %s1317, %s1330
          %s1332 = smul.addr %s27, 128
          %s1333 = scalar_lea.hbm %s8, %s1332
          %s1335 = sshll.u32 %s1320, 4
          %s1336 = int_to_ptr.vmem [resolvable:$true] %s1335
          %1338 = dma.vmem_to_hbm [thread:$0]  %s1336, 128, %s1333, %s1317
        $region56: #{cross_attention_forward.1} parent=51 // pred_fallthru
          _
        // Predicated region
        $region57: #{cross_attention_forward.1} parent=51 // pred_check
          %p1339 = pneg %p249
        $region58: #{cross_attention_forward.1} parent=51 // pred_check_branch
          %1341 = sbr.rel (%p1339) target = $region60
        $region59: #{cross_attention_forward.1} parent=51 // pred_region
          %s1343 = ssub.s32 256, 256
          %1344 = vsyncadd %s1322, %s1343
          %s1345 = smul.addr %s27, 2
          %s1346 = smul.addr %s1345, 128
          %s1347 = scalar_lea.hbm %s9, %s1346
          %s1348 = sshll.u32 %s1325, 4
          %s1349 = int_to_ptr.vmem [resolvable:$true] %s1348
          %1354 = dma.vmem_to_hbm [thread:$0]  %s1349, 256, %s1347, %s1322, 128, 128, 8
        $region60: #{cross_attention_forward.1} parent=51 // pred_fallthru
          _
      $region52: #{cross_attention_forward.1} parent=5 // pred_fallthru
        _
      %p1355 = scmp.le.s32.totalorder 2, %s22
      // Predicated region
      $region61: #{cross_attention_forward.1} parent=5 // pred_check
        %p1356 = pneg %p1355
      $region62: #{cross_attention_forward.1} parent=5 // pred_check_branch
        %1358 = sbr.rel (%p1356) target = $region64
      $region63: #{cross_attention_forward.1} parent=5 // pred_region
        %s1359 = ssub.s32 %s22, 2
        // Predicated region
        $region65: #{cross_attention_forward.1} parent=63 // pred_check
          %p1360 = pneg %p229
        $region66: #{cross_attention_forward.1} parent=63 // pred_check_branch
          %1362 = sbr.rel (%p1360) target = $region68
        $region67: #{cross_attention_forward.1} parent=63 // pred_region
          %s1363 = sand.u32 %s214, 1
          %s1364 = scalar_lea.sflag [#allocation3], %s1363
          %s1365 = sand.u32 %s214, 1
          %s1366 = smul.addr %s1365, 8
          %s1367 = scalar_lea.vmem [#allocation2], %s1366
          %1368 = dma.done %s1364, 128
        $region68: #{cross_attention_forward.1} parent=63 // pred_fallthru
          _
        // Predicated region
        $region69: #{cross_attention_forward.1} parent=63 // pred_check
          %p1369 = pneg %p255
        $region70: #{cross_attention_forward.1} parent=63 // pred_check_branch
          %1371 = sbr.rel (%p1369) target = $region72
        $region71: #{cross_attention_forward.1} parent=63 // pred_region
          %s1372 = sand.u32 %s240, 1
          %s1373 = scalar_lea.sflag [#allocation5], %s1372
          %s1374 = sand.u32 %s240, 1
          %s1375 = smul.addr %s1374, 16
          %s1376 = scalar_lea.vmem [#allocation4], %s1375
          %1377 = dma.done %s1373, 256
        $region72: #{cross_attention_forward.1} parent=63 // pred_fallthru
          _
      $region64: #{cross_attention_forward.1} parent=5 // pred_fallthru
        _
    $region6: #{cross_attention_forward.1} parent=1 // loop_footer
      %s26 = sadd.s32 1, %s22
    $region7: #{cross_attention_forward.1} parent=1 // loop_footer_branch
      %21 = sbr.rel target = $region3
    $region8: #{cross_attention_forward.1} parent=1 // loop_exit
      _
    %1378 = vsyncpa [#allocation3], 1
    %s1379 = scalar_lea.sflag [#allocation3], 1
    %1380 = vsyncpa %s1379, 1
    %1381 = vsyncpa [#allocation5], 1
    %s1382 = scalar_lea.sflag [#allocation5], 1
    %1383 = vsyncpa %s1382, 1

</llo_original>
